<compile_context>
chip_gen: v6e
topology: v6e:2x2x1
jax: 0.10.0
libtpu: 0.0.40
codegen_flags: <defaults>
</compile_context>

<pallas_src>
import jax
import jax.numpy as jnp
from jax import lax
from jax.experimental import pallas as pl
from jax.experimental.pallas import tpu as pltpu

INPUT = 3              # LSTM input feature size
HIDDEN = 32            # LSTM hidden size per direction
G = 8 * HIDDEN         # fused gate width: 4 gates x 2 directions = 256


def _round_up(n, m):
    return (n + m - 1) // m * m


def time_model_kernel(x_ref, wbig_ref, whh_ref, b_ref,
                      w1_ref, b1_ref, w2_ref, b2_ref,
                      out_ref, xw_ref):
    """One batch tile of TimeModel.forward.

    x_ref    : (TB, T*I)   lane-dense input tile (time*feature flattened)
    wbig_ref : (T*I, T*G)  block-diag over T of the fused (I, G) input weights
    whh_ref  : (2H, G)     block-diag fused recurrent weights [h_f | h_r] -> gates
    b_ref    : (1, G)      fused LSTM bias (b_ih + b_hh), both directions
    w1_ref   : (H, 16), b1_ref: (1, 16), w2_ref: (16, 3), b2_ref: (1, 3)
    out_ref  : (TB, 3)
    xw_ref   : (T, TB, G)  VMEM scratch: hoisted per-step gate pre-activations
    Gate/column layout inside G=256: [i_f i_r | f_f f_r | g_f g_r | o_f o_r].
    """
    TB = x_ref.shape[0]
    T = x_ref.shape[1] // INPUT
    H = HIDDEN
    H2 = 2 * H

    x = x_ref[...]
    whh = whh_ref[...]
    b = b_ref[...]

    # ---- Hoisted input projection: a single dense MXU matmul for all time
    # steps and both directions (column block t of wbig is exactly W_ih_fused
    # applied to x_t).  Stored into scratch as T lane-aligned (TB, 256) slabs.
    xw_all = jnp.dot(x, wbig_ref[...],
                     preferred_element_type=jnp.float32)        # (TB, T*G)
    for t in range(T):                                          # static slices
        xw_ref[t] = xw_all[:, t * G:(t + 1) * G] + b

    # Forward-direction columns are the first H lanes of every 2H gate block.
    lane = lax.broadcasted_iota(jnp.int32, (1, G), 1)
    fwd_mask = (lane % H2) < H

    # ---- Fused bidirectional recurrence: one (TB,2H)@(2H,G) matmul per step.
    def step(t, carry):
        h, c = carry
        # forward direction consumes x_t, reverse direction consumes x_{T-1-t}
        xg = jnp.where(fwd_mask, xw_ref[t], xw_ref[T - 1 - t])  # (TB, G)
        gates = xg + jnp.dot(h, whh, preferred_element_type=jnp.float32)
        i_g = jax.nn.sigmoid(gates[:, 0 * H2:1 * H2])
        f_g = jax.nn.sigmoid(gates[:, 1 * H2:2 * H2])
        g_g = jnp.tanh(gates[:, 2 * H2:3 * H2])
        o_g = jax.nn.sigmoid(gates[:, 3 * H2:4 * H2])
        c = f_g * c + i_g * g_g
        h = o_g * jnp.tanh(c)
        return h, c

    h0 = jnp.zeros((TB, H2), jnp.float32)
    c0 = jnp.zeros((TB, H2), jnp.float32)
    h, _ = lax.fori_loop(0, T, step, (h0, c0), unroll=True)

    # torch.sum(h_n, dim=0): forward-final + reverse-final hidden states
    h_sum = h[:, :H] + h[:, H:]                                 # (TB, H)

    # MLP head + L2 normalization (exact reference semantics: h/(||h||+1e-16)).
    z1 = jnp.maximum(
        jnp.dot(h_sum, w1_ref[...], preferred_element_type=jnp.float32)
        + b1_ref[...], 0.0)
    z2 = jnp.dot(z1, w2_ref[...], preferred_element_type=jnp.float32) + b2_ref[...]
    norm = jnp.sqrt(jnp.sum(z2 * z2, axis=-1, keepdims=True))
    # Output left at 3 lanes (masked store) — negligible at this B; for very
    # large B compute the head transposed so B sits on the lane axis.
    out_ref[...] = (z2 / (norm + 1e-16)).astype(out_ref.dtype)


def time_model_forward(x, packed, *, batch_tile=256, interpret=False):
    B, T, I = x.shape
    assert I == INPUT
    x2d = x.reshape(B, T * I).astype(jnp.float32)   # lane-dense (B, T*I)

    # Batch tile: multiple of 8 sublanes; pad B up to a whole number of tiles.
    tb = min(_round_up(B, 8), _round_up(batch_tile, 8))
    b_pad = _round_up(B, tb)
    if b_pad != B:
        x2d = jnp.pad(x2d, ((0, b_pad - B), (0, 0)))

    # Block-diagonal fused input-projection weight: (T*I, T*G).  O(T^2) weight,
    # intended for short sequences (this model: T is small & static).
    wih = packed["wih"]
    wbig = jnp.zeros((T * INPUT, T * G), jnp.float32)
    for t in range(T):
        wbig = wbig.at[t * INPUT:(t + 1) * INPUT, t * G:(t + 1) * G].set(wih)

    whh, b = packed["whh"], packed["b"]
    w1, b1, w2, b2 = packed["w1"], packed["b1"], packed["w2"], packed["b2"]

    out = pl.pallas_call(
        time_model_kernel,
        out_shape=jax.ShapeDtypeStruct((b_pad, 3), jnp.float32),
        grid=(b_pad // tb,),
        in_specs=[
            pl.BlockSpec((tb, T * INPUT), lambda i: (i, 0)),  # x tiled over batch
            pl.BlockSpec(wbig.shape, lambda i: (0, 0)),
            pl.BlockSpec(whh.shape, lambda i: (0, 0)),
            pl.BlockSpec(b.shape, lambda i: (0, 0)),
            pl.BlockSpec(w1.shape, lambda i: (0, 0)),
            pl.BlockSpec(b1.shape, lambda i: (0, 0)),
            pl.BlockSpec(w2.shape, lambda i: (0, 0)),
            pl.BlockSpec(b2.shape, lambda i: (0, 0)),
        ],
        out_specs=pl.BlockSpec((tb, 3), lambda i: (i, 0)),
        scratch_shapes=[pltpu.VMEM((T, tb, G), jnp.float32)],
        compiler_params=pltpu.CompilerParams(
            dimension_semantics=("parallel",),         # megacore shard on v7x
            vmem_limit_bytes=32 * 1024 * 1024),        # above v5e's 16 MiB default
        interpret=interpret,
    )(x2d, wbig, whh, b, w1, b1, w2, b2)
    return out[:B]


# ----------------------------- parameters ----------------------------------

def init_raw_params(key):
    """Deterministic init in the PyTorch module's native parameter shapes."""
    H, I = HIDDEN, INPUT
    bound = 1.0 / jnp.sqrt(jnp.float32(H))
    keys = jax.random.split(key, 12)

    def u(k, shape):
        return jax.random.uniform(k, shape, jnp.float32, -bound, bound)

    return {
        # nn.LSTM(3, 32, bidirectional=True): (4H, I), (4H, H), (4H,) per dir
        "wih_f": u(keys[0], (4 * H, I)), "whh_f": u(keys[1], (4 * H, H)),
        "bih_f": u(keys[2], (4 * H,)),   "bhh_f": u(keys[3], (4 * H,)),
        "wih_r": u(keys[4], (4 * H, I)), "whh_r": u(keys[5], (4 * H, H)),
        "bih_r": u(keys[6], (4 * H,)),   "bhh_r": u(keys[7], (4 * H,)),
        # nn.Linear(32, 16), nn.Linear(16, 3)
        "w1": u(keys[8], (16, H)),  "b1": u(keys[9], (16,)),
        "w2": u(keys[10], (3, 16)), "b2": u(keys[11], (3,)),
    }


def pack_params(raw):
    """Pack raw (PyTorch-layout) params into the fused kernel layout.

    Fused gate column order: [i_f i_r | f_f f_r | g_f g_r | o_f o_r], 32 each.
    """
    H = HIDDEN
    H2 = 2 * H
    wih_f_t, wih_r_t = raw["wih_f"].T, raw["wih_r"].T      # (I, 4H)
    whh_f_t, whh_r_t = raw["whh_f"].T, raw["whh_r"].T      # (H, 4H)
    b_f = raw["bih_f"] + raw["bhh_f"]                      # (4H,)
    b_r = raw["bih_r"] + raw["bhh_r"]

    wih = jnp.zeros((INPUT, G), jnp.float32)
    whh = jnp.zeros((H2, G), jnp.float32)                  # block-diagonal
    b = jnp.zeros((1, G), jnp.float32)
    for k in range(4):                                     # gates i, f, g, o
        cf = slice(k * H2, k * H2 + H)                     # forward columns
        cr = slice(k * H2 + H, (k + 1) * H2)               # reverse columns
        src = slice(k * H, (k + 1) * H)
        wih = wih.at[:, cf].set(wih_f_t[:, src])
        wih = wih.at[:, cr].set(wih_r_t[:, src])
        whh = whh.at[:H, cf].set(whh_f_t[:, src])          # h_f -> fwd gates
        whh = whh.at[H:, cr].set(whh_r_t[:, src])          # h_r -> rev gates
        b = b.at[0, cf].set(b_f[src])
        b = b.at[0, cr].set(b_r[src])

    return {
        "wih": wih, "whh": whh, "b": b,
        "w1": raw["w1"].T, "b1": raw["b1"].reshape(1, -1),
        "w2": raw["w2"].T, "b2": raw["b2"].reshape(1, -1),
    }


# ------------------------- pure-JAX reference -------------------------------

def time_model_reference(x, raw):
    """Plain-JAX mirror of TimeModel.forward (high-precision f32 matmuls)."""
    H = HIDDEN
    hp = jax.lax.Precision.HIGHEST

    def run_dir(xs, wih, whh, bih, bhh):
        B = xs.shape[0]
        h = jnp.zeros((B, H), jnp.float32)
        c = jnp.zeros((B, H), jnp.float32)
        for t in range(xs.shape[1]):
            g = (jnp.dot(xs[:, t, :], wih.T, precision=hp) + bih
                 + jnp.dot(h, whh.T, precision=hp) + bhh)
            i = jax.nn.sigmoid(g[:, :H])
            f = jax.nn.sigmoid(g[:, H:2 * H])
            gg = jnp.tanh(g[:, 2 * H:3 * H])
            o = jax.nn.sigmoid(g[:, 3 * H:])
            c = f * c + i * gg
            h = o * jnp.tanh(c)
        return h

    h = (run_dir(x, raw["wih_f"], raw["whh_f"], raw["bih_f"], raw["bhh_f"])
         + run_dir(x[:, ::-1, :], raw["wih_r"], raw["whh_r"],
                   raw["bih_r"], raw["bhh_r"]))
    z1 = jnp.maximum(jnp.dot(h, raw["w1"].T, precision=hp) + raw["b1"], 0.0)
    z2 = jnp.dot(z1, raw["w2"].T, precision=hp) + raw["b2"]
    norm = jnp.sqrt(jnp.sum(z2 * z2, axis=-1, keepdims=True))
    return z2 / (norm + 1e-16)


if __name__ == "__main__":
    key = jax.random.PRNGKey(0)
    k_x, k_p = jax.random.split(key)

    B, T = 2, 8                       # small batch, short sequence
    x = jax.random.normal(k_x, (B, T, INPUT), dtype=jnp.float32)
    raw = init_raw_params(k_p)
    packed = pack_params(raw)

    out = time_model_forward(x, packed)
    out = jax.block_until_ready(out)
    assert out.shape == (B, 3)

    ref = time_model_reference(x, raw)
    assert bool(jnp.allclose(out, ref, atol=1e-3, rtol=1e-3)), \
        "Pallas kernel does not match the JAX reference"
    print("KERNEL_OK")
</pallas_src>

<mosaic_0001>
module attributes {stable_mosaic.version = 11 : i64} {
  func.func @time_model_kernel(%arg0: i32, %arg1: memref<8x24xf32, #tpu.memory_space<vmem>>, %arg2: memref<24x2048xf32, #tpu.memory_space<vmem>>, %arg3: memref<64x256xf32, #tpu.memory_space<vmem>>, %arg4: memref<1x256xf32, #tpu.memory_space<vmem>>, %arg5: memref<32x16xf32, #tpu.memory_space<vmem>>, %arg6: memref<1x16xf32, #tpu.memory_space<vmem>>, %arg7: memref<16x3xf32, #tpu.memory_space<vmem>>, %arg8: memref<1x3xf32, #tpu.memory_space<vmem>>, %arg9: memref<8x3xf32, #tpu.memory_space<vmem>>, %arg10: memref<8x8x256xf32, #tpu.memory_space<vmem>>) attributes {dimension_semantics = [#tpu.dimension_semantics<parallel>], iteration_bounds = array<i64: 1>, scalar_prefetch = 0 : i64, scratch_operands = 1 : i64, tpu.core_type = #tpu.core_type<tc>, window_params = [{transform_indices = @transform_0, window_bounds = array<i64: 8, 24>}, {pipeline_mode = #tpu.pipeline_mode<synchronous>, transform_indices = @transform_1, window_bounds = array<i64: 24, 2048>}, {pipeline_mode = #tpu.pipeline_mode<synchronous>, transform_indices = @transform_2, window_bounds = array<i64: 64, 256>}, {pipeline_mode = #tpu.pipeline_mode<synchronous>, transform_indices = @transform_3, window_bounds = array<i64: 1, 256>}, {pipeline_mode = #tpu.pipeline_mode<synchronous>, transform_indices = @transform_4, window_bounds = array<i64: 32, 16>}, {pipeline_mode = #tpu.pipeline_mode<synchronous>, transform_indices = @transform_5, window_bounds = array<i64: 1, 16>}, {pipeline_mode = #tpu.pipeline_mode<synchronous>, transform_indices = @transform_6, window_bounds = array<i64: 16, 3>}, {pipeline_mode = #tpu.pipeline_mode<synchronous>, transform_indices = @transform_7, window_bounds = array<i64: 1, 3>}, {transform_indices = @transform_8, window_bounds = array<i64: 8, 3>}]} {
    %c0 = arith.constant 0 : index
    %c0_0 = arith.constant 0 : index
    %0 = vector.load %arg1[%c0, %c0_0] : memref<8x24xf32, #tpu.memory_space<vmem>>, vector<8x24xf32>
    %c0_1 = arith.constant 0 : index
    %c0_2 = arith.constant 0 : index
    %1 = vector.load %arg3[%c0_1, %c0_2] : memref<64x256xf32, #tpu.memory_space<vmem>>, vector<64x256xf32>
    %c0_3 = arith.constant 0 : index
    %c0_4 = arith.constant 0 : index
    %2 = vector.load %arg4[%c0_3, %c0_4] : memref<1x256xf32, #tpu.memory_space<vmem>>, vector<1x256xf32>
    %c0_5 = arith.constant 0 : index
    %c0_6 = arith.constant 0 : index
    %3 = vector.load %arg2[%c0_5, %c0_6] : memref<24x2048xf32, #tpu.memory_space<vmem>>, vector<24x2048xf32>
    %cst = arith.constant dense<0.000000e+00> : vector<8x2048xf32>
    %4 = tpu.matmul %0, %3, %cst {dimension_numbers = #tpu.dot_dimension_numbers<[1], [0], [0], [1], [0, 0, 1, 1], [], []>} : vector<8x24xf32>, vector<24x2048xf32>, vector<8x2048xf32> -> vector<8x2048xf32>
    %5 = vector.extract_strided_slice %4 {offsets = [0, 0], sizes = [8, 256], strides = [1, 1]} : vector<8x2048xf32> to vector<8x256xf32>
    %6 = vector.broadcast %2 : vector<1x256xf32> to vector<8x256xf32>
    %7 = arith.addf %5, %6 : vector<8x256xf32>
    %c0_7 = arith.constant 0 : index
    %c0_8 = arith.constant 0 : index
    %c0_9 = arith.constant 0 : index
    %8 = vector.load %arg10[%c0_7, %c0_8, %c0_9] : memref<8x8x256xf32, #tpu.memory_space<vmem>>, vector<1x8x256xf32>
    %9 = vector.shape_cast %8 : vector<1x8x256xf32> to vector<8x256xf32>
    %10 = vector.shape_cast %7 : vector<8x256xf32> to vector<1x8x256xf32>
    tpu.vector_store %arg10[%c0_7, %c0_8, %c0_9], %10 {strides = array<i32>} : memref<8x8x256xf32, #tpu.memory_space<vmem>>, vector<1x8x256xf32>,
    %11 = vector.extract_strided_slice %4 {offsets = [0, 256], sizes = [8, 256], strides = [1, 1]} : vector<8x2048xf32> to vector<8x256xf32>
    %12 = vector.broadcast %2 : vector<1x256xf32> to vector<8x256xf32>
    %13 = arith.addf %11, %12 : vector<8x256xf32>
    %c1 = arith.constant 1 : index
    %c0_10 = arith.constant 0 : index
    %c0_11 = arith.constant 0 : index
    %14 = vector.load %arg10[%c1, %c0_10, %c0_11] : memref<8x8x256xf32, #tpu.memory_space<vmem>>, vector<1x8x256xf32>
    %15 = vector.shape_cast %14 : vector<1x8x256xf32> to vector<8x256xf32>
    %16 = vector.shape_cast %13 : vector<8x256xf32> to vector<1x8x256xf32>
    tpu.vector_store %arg10[%c1, %c0_10, %c0_11], %16 {strides = array<i32>} : memref<8x8x256xf32, #tpu.memory_space<vmem>>, vector<1x8x256xf32>,
    %17 = vector.extract_strided_slice %4 {offsets = [0, 512], sizes = [8, 256], strides = [1, 1]} : vector<8x2048xf32> to vector<8x256xf32>
    %18 = vector.broadcast %2 : vector<1x256xf32> to vector<8x256xf32>
    %19 = arith.addf %17, %18 : vector<8x256xf32>
    %c2 = arith.constant 2 : index
    %c0_12 = arith.constant 0 : index
    %c0_13 = arith.constant 0 : index
    %20 = vector.load %arg10[%c2, %c0_12, %c0_13] : memref<8x8x256xf32, #tpu.memory_space<vmem>>, vector<1x8x256xf32>
    %21 = vector.shape_cast %20 : vector<1x8x256xf32> to vector<8x256xf32>
    %22 = vector.shape_cast %19 : vector<8x256xf32> to vector<1x8x256xf32>
    tpu.vector_store %arg10[%c2, %c0_12, %c0_13], %22 {strides = array<i32>} : memref<8x8x256xf32, #tpu.memory_space<vmem>>, vector<1x8x256xf32>,
    %23 = vector.extract_strided_slice %4 {offsets = [0, 768], sizes = [8, 256], strides = [1, 1]} : vector<8x2048xf32> to vector<8x256xf32>
    %24 = vector.broadcast %2 : vector<1x256xf32> to vector<8x256xf32>
    %25 = arith.addf %23, %24 : vector<8x256xf32>
    %c3 = arith.constant 3 : index
    %c0_14 = arith.constant 0 : index
    %c0_15 = arith.constant 0 : index
    %26 = vector.load %arg10[%c3, %c0_14, %c0_15] : memref<8x8x256xf32, #tpu.memory_space<vmem>>, vector<1x8x256xf32>
    %27 = vector.shape_cast %26 : vector<1x8x256xf32> to vector<8x256xf32>
    %28 = vector.shape_cast %25 : vector<8x256xf32> to vector<1x8x256xf32>
    tpu.vector_store %arg10[%c3, %c0_14, %c0_15], %28 {strides = array<i32>} : memref<8x8x256xf32, #tpu.memory_space<vmem>>, vector<1x8x256xf32>,
    %29 = vector.extract_strided_slice %4 {offsets = [0, 1024], sizes = [8, 256], strides = [1, 1]} : vector<8x2048xf32> to vector<8x256xf32>
    %30 = vector.broadcast %2 : vector<1x256xf32> to vector<8x256xf32>
    %31 = arith.addf %29, %30 : vector<8x256xf32>
    %c4 = arith.constant 4 : index
    %c0_16 = arith.constant 0 : index
    %c0_17 = arith.constant 0 : index
    %32 = vector.load %arg10[%c4, %c0_16, %c0_17] : memref<8x8x256xf32, #tpu.memory_space<vmem>>, vector<1x8x256xf32>
    %33 = vector.shape_cast %32 : vector<1x8x256xf32> to vector<8x256xf32>
    %34 = vector.shape_cast %31 : vector<8x256xf32> to vector<1x8x256xf32>
    tpu.vector_store %arg10[%c4, %c0_16, %c0_17], %34 {strides = array<i32>} : memref<8x8x256xf32, #tpu.memory_space<vmem>>, vector<1x8x256xf32>,
    %35 = vector.extract_strided_slice %4 {offsets = [0, 1280], sizes = [8, 256], strides = [1, 1]} : vector<8x2048xf32> to vector<8x256xf32>
    %36 = vector.broadcast %2 : vector<1x256xf32> to vector<8x256xf32>
    %37 = arith.addf %35, %36 : vector<8x256xf32>
    %c5 = arith.constant 5 : index
    %c0_18 = arith.constant 0 : index
    %c0_19 = arith.constant 0 : index
    %38 = vector.load %arg10[%c5, %c0_18, %c0_19] : memref<8x8x256xf32, #tpu.memory_space<vmem>>, vector<1x8x256xf32>
    %39 = vector.shape_cast %38 : vector<1x8x256xf32> to vector<8x256xf32>
    %40 = vector.shape_cast %37 : vector<8x256xf32> to vector<1x8x256xf32>
    tpu.vector_store %arg10[%c5, %c0_18, %c0_19], %40 {strides = array<i32>} : memref<8x8x256xf32, #tpu.memory_space<vmem>>, vector<1x8x256xf32>,
    %41 = vector.extract_strided_slice %4 {offsets = [0, 1536], sizes = [8, 256], strides = [1, 1]} : vector<8x2048xf32> to vector<8x256xf32>
    %42 = vector.broadcast %2 : vector<1x256xf32> to vector<8x256xf32>
    %43 = arith.addf %41, %42 : vector<8x256xf32>
    %c6 = arith.constant 6 : index
    %c0_20 = arith.constant 0 : index
    %c0_21 = arith.constant 0 : index
    %44 = vector.load %arg10[%c6, %c0_20, %c0_21] : memref<8x8x256xf32, #tpu.memory_space<vmem>>, vector<1x8x256xf32>
    %45 = vector.shape_cast %44 : vector<1x8x256xf32> to vector<8x256xf32>
    %46 = vector.shape_cast %43 : vector<8x256xf32> to vector<1x8x256xf32>
    tpu.vector_store %arg10[%c6, %c0_20, %c0_21], %46 {strides = array<i32>} : memref<8x8x256xf32, #tpu.memory_space<vmem>>, vector<1x8x256xf32>,
    %47 = vector.extract_strided_slice %4 {offsets = [0, 1792], sizes = [8, 256], strides = [1, 1]} : vector<8x2048xf32> to vector<8x256xf32>
    %48 = vector.broadcast %2 : vector<1x256xf32> to vector<8x256xf32>
    %49 = arith.addf %47, %48 : vector<8x256xf32>
    %c7 = arith.constant 7 : index
    %c0_22 = arith.constant 0 : index
    %c0_23 = arith.constant 0 : index
    %50 = vector.load %arg10[%c7, %c0_22, %c0_23] : memref<8x8x256xf32, #tpu.memory_space<vmem>>, vector<1x8x256xf32>
    %51 = vector.shape_cast %50 : vector<1x8x256xf32> to vector<8x256xf32>
    %52 = vector.shape_cast %49 : vector<8x256xf32> to vector<1x8x256xf32>
    tpu.vector_store %arg10[%c7, %c0_22, %c0_23], %52 {strides = array<i32>} : memref<8x8x256xf32, #tpu.memory_space<vmem>>, vector<1x8x256xf32>,
    %53 = tpu.iota {dimensions = array<i32: 1>} : vector<1x256xi32>
    %c64_i32 = arith.constant 64 : i32
    %c0_i32 = arith.constant 0 : i32
    %54 = arith.cmpi eq, %c64_i32, %c0_i32 : i32
    %c1_i32 = arith.constant 1 : i32
    %55 = arith.select %54, %c1_i32, %c64_i32 : i32
    %56 = vector.broadcast %55 : i32 to vector<1x256xi32>
    %57 = arith.remsi %53, %56 : vector<1x256xi32>
    %c0_i32_24 = arith.constant 0 : i32
    %58 = vector.broadcast %c0_i32_24 : i32 to vector<1x256xi32>
    %59 = arith.cmpi ne, %57, %58 : vector<1x256xi32>
    %c0_i32_25 = arith.constant 0 : i32
    %60 = vector.broadcast %c0_i32_25 : i32 to vector<1x256xi32>
    %61 = arith.cmpi slt, %57, %60 : vector<1x256xi32>
    %c0_i32_26 = arith.constant 0 : i32
    %62 = arith.cmpi slt, %55, %c0_i32_26 : i32
    %63 = vector.broadcast %62 : i1 to vector<1x256xi1>
    %64 = vector.broadcast %63 : vector<1x256xi1> to vector<1x256xi1>
    %65 = arith.xori %61, %64 : vector<1x256xi1>
    %66 = arith.andi %65, %59 : vector<1x256xi1>
    %67 = vector.broadcast %55 : i32 to vector<1x256xi32>
    %68 = arith.addi %57, %67 : vector<1x256xi32>
    %69 = arith.select %66, %68, %57 : vector<1x256xi1>, vector<1x256xi32>
    %c32_i32 = arith.constant 32 : i32
    %70 = vector.broadcast %c32_i32 : i32 to vector<1x256xi32>
    %71 = arith.cmpi slt, %69, %70 : vector<1x256xi32>
    %cst_27 = arith.constant 0.000000e+00 : f32
    %72 = vector.broadcast %cst_27 : f32 to vector<8x64xf32>
    %cst_28 = arith.constant 0.000000e+00 : f32
    %73 = vector.broadcast %cst_28 : f32 to vector<8x64xf32>
    %c0_i32_29 = arith.constant 0 : i32
    %74 = arith.index_cast %c0_i32_29 : i32 to index
    %c0_30 = arith.constant 0 : index
    %c0_31 = arith.constant 0 : index
    %75 = vector.load %arg10[%74, %c0_30, %c0_31] : memref<8x8x256xf32, #tpu.memory_space<vmem>>, vector<1x8x256xf32>
    %76 = vector.shape_cast %75 : vector<1x8x256xf32> to vector<8x256xf32>
    %c7_i32 = arith.constant 7 : i32
    %77 = arith.subi %c7_i32, %c0_i32_29 : i32
    %78 = arith.index_cast %77 : i32 to index
    %c0_32 = arith.constant 0 : index
    %c0_33 = arith.constant 0 : index
    %79 = vector.load %arg10[%78, %c0_32, %c0_33] : memref<8x8x256xf32, #tpu.memory_space<vmem>>, vector<1x8x256xf32>
    %80 = vector.shape_cast %79 : vector<1x8x256xf32> to vector<8x256xf32>
    %81 = vector.shape_cast %71 : vector<1x256xi1> to vector<1x256xi1>
    %82 = vector.broadcast %81 : vector<1x256xi1> to vector<8x256xi1>
    %83 = arith.select %82, %76, %80 : vector<8x256xi1>, vector<8x256xf32>
    %cst_34 = arith.constant dense<0.000000e+00> : vector<8x256xf32>
    %84 = tpu.matmul %72, %1, %cst_34 {dimension_numbers = #tpu.dot_dimension_numbers<[1], [0], [0], [1], [0, 0, 1, 1], [], []>} : vector<8x64xf32>, vector<64x256xf32>, vector<8x256xf32> -> vector<8x256xf32>
    %85 = arith.addf %83, %84 : vector<8x256xf32>
    %86 = vector.extract_strided_slice %85 {offsets = [0, 0], sizes = [8, 64], strides = [1, 1]} : vector<8x256xf32> to vector<8x64xf32>
    %87 = arith.negf %86 : vector<8x64xf32>
    %88 = math.exp %87 : vector<8x64xf32>
    %cst_35 = arith.constant 1.000000e+00 : f32
    %89 = vector.broadcast %cst_35 : f32 to vector<8x64xf32>
    %90 = arith.addf %89, %88 : vector<8x64xf32>
    %91 = arith.divf %89, %90 : vector<8x64xf32>
    %92 = vector.extract_strided_slice %85 {offsets = [0, 64], sizes = [8, 64], strides = [1, 1]} : vector<8x256xf32> to vector<8x64xf32>
    %93 = arith.negf %92 : vector<8x64xf32>
    %94 = math.exp %93 : vector<8x64xf32>
    %cst_36 = arith.constant 1.000000e+00 : f32
    %95 = vector.broadcast %cst_36 : f32 to vector<8x64xf32>
    %96 = arith.addf %95, %94 : vector<8x64xf32>
    %97 = arith.divf %95, %96 : vector<8x64xf32>
    %98 = vector.extract_strided_slice %85 {offsets = [0, 128], sizes = [8, 64], strides = [1, 1]} : vector<8x256xf32> to vector<8x64xf32>
    %99 = math.tanh %98 : vector<8x64xf32>
    %100 = vector.extract_strided_slice %85 {offsets = [0, 192], sizes = [8, 64], strides = [1, 1]} : vector<8x256xf32> to vector<8x64xf32>
    %101 = arith.negf %100 : vector<8x64xf32>
    %102 = math.exp %101 : vector<8x64xf32>
    %cst_37 = arith.constant 1.000000e+00 : f32
    %103 = vector.broadcast %cst_37 : f32 to vector<8x64xf32>
    %104 = arith.addf %103, %102 : vector<8x64xf32>
    %105 = arith.divf %103, %104 : vector<8x64xf32>
    %106 = arith.mulf %97, %73 : vector<8x64xf32>
    %107 = arith.mulf %91, %99 : vector<8x64xf32>
    %108 = arith.addf %106, %107 : vector<8x64xf32>
    %109 = math.tanh %108 : vector<8x64xf32>
    %110 = arith.mulf %105, %109 : vector<8x64xf32>
    %c1_i32_38 = arith.constant 1 : i32
    %111 = arith.index_cast %c1_i32_38 : i32 to index
    %c0_39 = arith.constant 0 : index
    %c0_40 = arith.constant 0 : index
    %112 = vector.load %arg10[%111, %c0_39, %c0_40] : memref<8x8x256xf32, #tpu.memory_space<vmem>>, vector<1x8x256xf32>
    %113 = vector.shape_cast %112 : vector<1x8x256xf32> to vector<8x256xf32>
    %c7_i32_41 = arith.constant 7 : i32
    %114 = arith.subi %c7_i32_41, %c1_i32_38 : i32
    %115 = arith.index_cast %114 : i32 to index
    %c0_42 = arith.constant 0 : index
    %c0_43 = arith.constant 0 : index
    %116 = vector.load %arg10[%115, %c0_42, %c0_43] : memref<8x8x256xf32, #tpu.memory_space<vmem>>, vector<1x8x256xf32>
    %117 = vector.shape_cast %116 : vector<1x8x256xf32> to vector<8x256xf32>
    %118 = vector.shape_cast %71 : vector<1x256xi1> to vector<1x256xi1>
    %119 = vector.broadcast %118 : vector<1x256xi1> to vector<8x256xi1>
    %120 = arith.select %119, %113, %117 : vector<8x256xi1>, vector<8x256xf32>
    %cst_44 = arith.constant dense<0.000000e+00> : vector<8x256xf32>
    %121 = tpu.matmul %110, %1, %cst_44 {dimension_numbers = #tpu.dot_dimension_numbers<[1], [0], [0], [1], [0, 0, 1, 1], [], []>} : vector<8x64xf32>, vector<64x256xf32>, vector<8x256xf32> -> vector<8x256xf32>
    %122 = arith.addf %120, %121 : vector<8x256xf32>
    %123 = vector.extract_strided_slice %122 {offsets = [0, 0], sizes = [8, 64], strides = [1, 1]} : vector<8x256xf32> to vector<8x64xf32>
    %124 = arith.negf %123 : vector<8x64xf32>
    %125 = math.exp %124 : vector<8x64xf32>
    %cst_45 = arith.constant 1.000000e+00 : f32
    %126 = vector.broadcast %cst_45 : f32 to vector<8x64xf32>
    %127 = arith.addf %126, %125 : vector<8x64xf32>
    %128 = arith.divf %126, %127 : vector<8x64xf32>
    %129 = vector.extract_strided_slice %122 {offsets = [0, 64], sizes = [8, 64], strides = [1, 1]} : vector<8x256xf32> to vector<8x64xf32>
    %130 = arith.negf %129 : vector<8x64xf32>
    %131 = math.exp %130 : vector<8x64xf32>
    %cst_46 = arith.constant 1.000000e+00 : f32
    %132 = vector.broadcast %cst_46 : f32 to vector<8x64xf32>
    %133 = arith.addf %132, %131 : vector<8x64xf32>
    %134 = arith.divf %132, %133 : vector<8x64xf32>
    %135 = vector.extract_strided_slice %122 {offsets = [0, 128], sizes = [8, 64], strides = [1, 1]} : vector<8x256xf32> to vector<8x64xf32>
    %136 = math.tanh %135 : vector<8x64xf32>
    %137 = vector.extract_strided_slice %122 {offsets = [0, 192], sizes = [8, 64], strides = [1, 1]} : vector<8x256xf32> to vector<8x64xf32>
    %138 = arith.negf %137 : vector<8x64xf32>
    %139 = math.exp %138 : vector<8x64xf32>
    %cst_47 = arith.constant 1.000000e+00 : f32
    %140 = vector.broadcast %cst_47 : f32 to vector<8x64xf32>
    %141 = arith.addf %140, %139 : vector<8x64xf32>
    %142 = arith.divf %140, %141 : vector<8x64xf32>
    %143 = arith.mulf %134, %108 : vector<8x64xf32>
    %144 = arith.mulf %128, %136 : vector<8x64xf32>
    %145 = arith.addf %143, %144 : vector<8x64xf32>
    %146 = math.tanh %145 : vector<8x64xf32>
    %147 = arith.mulf %142, %146 : vector<8x64xf32>
    %c2_i32 = arith.constant 2 : i32
    %148 = arith.index_cast %c2_i32 : i32 to index
    %c0_48 = arith.constant 0 : index
    %c0_49 = arith.constant 0 : index
    %149 = vector.load %arg10[%148, %c0_48, %c0_49] : memref<8x8x256xf32, #tpu.memory_space<vmem>>, vector<1x8x256xf32>
    %150 = vector.shape_cast %149 : vector<1x8x256xf32> to vector<8x256xf32>
    %c7_i32_50 = arith.constant 7 : i32
    %151 = arith.subi %c7_i32_50, %c2_i32 : i32
    %152 = arith.index_cast %151 : i32 to index
    %c0_51 = arith.constant 0 : index
    %c0_52 = arith.constant 0 : index
    %153 = vector.load %arg10[%152, %c0_51, %c0_52] : memref<8x8x256xf32, #tpu.memory_space<vmem>>, vector<1x8x256xf32>
    %154 = vector.shape_cast %153 : vector<1x8x256xf32> to vector<8x256xf32>
    %155 = vector.shape_cast %71 : vector<1x256xi1> to vector<1x256xi1>
    %156 = vector.broadcast %155 : vector<1x256xi1> to vector<8x256xi1>
    %157 = arith.select %156, %150, %154 : vector<8x256xi1>, vector<8x256xf32>
    %cst_53 = arith.constant dense<0.000000e+00> : vector<8x256xf32>
    %158 = tpu.matmul %147, %1, %cst_53 {dimension_numbers = #tpu.dot_dimension_numbers<[1], [0], [0], [1], [0, 0, 1, 1], [], []>} : vector<8x64xf32>, vector<64x256xf32>, vector<8x256xf32> -> vector<8x256xf32>
    %159 = arith.addf %157, %158 : vector<8x256xf32>
    %160 = vector.extract_strided_slice %159 {offsets = [0, 0], sizes = [8, 64], strides = [1, 1]} : vector<8x256xf32> to vector<8x64xf32>
    %161 = arith.negf %160 : vector<8x64xf32>
    %162 = math.exp %161 : vector<8x64xf32>
    %cst_54 = arith.constant 1.000000e+00 : f32
    %163 = vector.broadcast %cst_54 : f32 to vector<8x64xf32>
    %164 = arith.addf %163, %162 : vector<8x64xf32>
    %165 = arith.divf %163, %164 : vector<8x64xf32>
    %166 = vector.extract_strided_slice %159 {offsets = [0, 64], sizes = [8, 64], strides = [1, 1]} : vector<8x256xf32> to vector<8x64xf32>
    %167 = arith.negf %166 : vector<8x64xf32>
    %168 = math.exp %167 : vector<8x64xf32>
    %cst_55 = arith.constant 1.000000e+00 : f32
    %169 = vector.broadcast %cst_55 : f32 to vector<8x64xf32>
    %170 = arith.addf %169, %168 : vector<8x64xf32>
    %171 = arith.divf %169, %170 : vector<8x64xf32>
    %172 = vector.extract_strided_slice %159 {offsets = [0, 128], sizes = [8, 64], strides = [1, 1]} : vector<8x256xf32> to vector<8x64xf32>
    %173 = math.tanh %172 : vector<8x64xf32>
    %174 = vector.extract_strided_slice %159 {offsets = [0, 192], sizes = [8, 64], strides = [1, 1]} : vector<8x256xf32> to vector<8x64xf32>
    %175 = arith.negf %174 : vector<8x64xf32>
    %176 = math.exp %175 : vector<8x64xf32>
    %cst_56 = arith.constant 1.000000e+00 : f32
    %177 = vector.broadcast %cst_56 : f32 to vector<8x64xf32>
    %178 = arith.addf %177, %176 : vector<8x64xf32>
    %179 = arith.divf %177, %178 : vector<8x64xf32>
    %180 = arith.mulf %171, %145 : vector<8x64xf32>
    %181 = arith.mulf %165, %173 : vector<8x64xf32>
    %182 = arith.addf %180, %181 : vector<8x64xf32>
    %183 = math.tanh %182 : vector<8x64xf32>
    %184 = arith.mulf %179, %183 : vector<8x64xf32>
    %c3_i32 = arith.constant 3 : i32
    %185 = arith.index_cast %c3_i32 : i32 to index
    %c0_57 = arith.constant 0 : index
    %c0_58 = arith.constant 0 : index
    %186 = vector.load %arg10[%185, %c0_57, %c0_58] : memref<8x8x256xf32, #tpu.memory_space<vmem>>, vector<1x8x256xf32>
    %187 = vector.shape_cast %186 : vector<1x8x256xf32> to vector<8x256xf32>
    %c7_i32_59 = arith.constant 7 : i32
    %188 = arith.subi %c7_i32_59, %c3_i32 : i32
    %189 = arith.index_cast %188 : i32 to index
    %c0_60 = arith.constant 0 : index
    %c0_61 = arith.constant 0 : index
    %190 = vector.load %arg10[%189, %c0_60, %c0_61] : memref<8x8x256xf32, #tpu.memory_space<vmem>>, vector<1x8x256xf32>
    %191 = vector.shape_cast %190 : vector<1x8x256xf32> to vector<8x256xf32>
    %192 = vector.shape_cast %71 : vector<1x256xi1> to vector<1x256xi1>
    %193 = vector.broadcast %192 : vector<1x256xi1> to vector<8x256xi1>
    %194 = arith.select %193, %187, %191 : vector<8x256xi1>, vector<8x256xf32>
    %cst_62 = arith.constant dense<0.000000e+00> : vector<8x256xf32>
    %195 = tpu.matmul %184, %1, %cst_62 {dimension_numbers = #tpu.dot_dimension_numbers<[1], [0], [0], [1], [0, 0, 1, 1], [], []>} : vector<8x64xf32>, vector<64x256xf32>, vector<8x256xf32> -> vector<8x256xf32>
    %196 = arith.addf %194, %195 : vector<8x256xf32>
    %197 = vector.extract_strided_slice %196 {offsets = [0, 0], sizes = [8, 64], strides = [1, 1]} : vector<8x256xf32> to vector<8x64xf32>
    %198 = arith.negf %197 : vector<8x64xf32>
    %199 = math.exp %198 : vector<8x64xf32>
    %cst_63 = arith.constant 1.000000e+00 : f32
    %200 = vector.broadcast %cst_63 : f32 to vector<8x64xf32>
    %201 = arith.addf %200, %199 : vector<8x64xf32>
    %202 = arith.divf %200, %201 : vector<8x64xf32>
    %203 = vector.extract_strided_slice %196 {offsets = [0, 64], sizes = [8, 64], strides = [1, 1]} : vector<8x256xf32> to vector<8x64xf32>
    %204 = arith.negf %203 : vector<8x64xf32>
    %205 = math.exp %204 : vector<8x64xf32>
    %cst_64 = arith.constant 1.000000e+00 : f32
    %206 = vector.broadcast %cst_64 : f32 to vector<8x64xf32>
    %207 = arith.addf %206, %205 : vector<8x64xf32>
    %208 = arith.divf %206, %207 : vector<8x64xf32>
    %209 = vector.extract_strided_slice %196 {offsets = [0, 128], sizes = [8, 64], strides = [1, 1]} : vector<8x256xf32> to vector<8x64xf32>
    %210 = math.tanh %209 : vector<8x64xf32>
    %211 = vector.extract_strided_slice %196 {offsets = [0, 192], sizes = [8, 64], strides = [1, 1]} : vector<8x256xf32> to vector<8x64xf32>
    %212 = arith.negf %211 : vector<8x64xf32>
    %213 = math.exp %212 : vector<8x64xf32>
    %cst_65 = arith.constant 1.000000e+00 : f32
    %214 = vector.broadcast %cst_65 : f32 to vector<8x64xf32>
    %215 = arith.addf %214, %213 : vector<8x64xf32>
    %216 = arith.divf %214, %215 : vector<8x64xf32>
    %217 = arith.mulf %208, %182 : vector<8x64xf32>
    %218 = arith.mulf %202, %210 : vector<8x64xf32>
    %219 = arith.addf %217, %218 : vector<8x64xf32>
    %220 = math.tanh %219 : vector<8x64xf32>
    %221 = arith.mulf %216, %220 : vector<8x64xf32>
    %c4_i32 = arith.constant 4 : i32
    %222 = arith.index_cast %c4_i32 : i32 to index
    %c0_66 = arith.constant 0 : index
    %c0_67 = arith.constant 0 : index
    %223 = vector.load %arg10[%222, %c0_66, %c0_67] : memref<8x8x256xf32, #tpu.memory_space<vmem>>, vector<1x8x256xf32>
    %224 = vector.shape_cast %223 : vector<1x8x256xf32> to vector<8x256xf32>
    %c7_i32_68 = arith.constant 7 : i32
    %225 = arith.subi %c7_i32_68, %c4_i32 : i32
    %226 = arith.index_cast %225 : i32 to index
    %c0_69 = arith.constant 0 : index
    %c0_70 = arith.constant 0 : index
    %227 = vector.load %arg10[%226, %c0_69, %c0_70] : memref<8x8x256xf32, #tpu.memory_space<vmem>>, vector<1x8x256xf32>
    %228 = vector.shape_cast %227 : vector<1x8x256xf32> to vector<8x256xf32>
    %229 = vector.shape_cast %71 : vector<1x256xi1> to vector<1x256xi1>
    %230 = vector.broadcast %229 : vector<1x256xi1> to vector<8x256xi1>
    %231 = arith.select %230, %224, %228 : vector<8x256xi1>, vector<8x256xf32>
    %cst_71 = arith.constant dense<0.000000e+00> : vector<8x256xf32>
    %232 = tpu.matmul %221, %1, %cst_71 {dimension_numbers = #tpu.dot_dimension_numbers<[1], [0], [0], [1], [0, 0, 1, 1], [], []>} : vector<8x64xf32>, vector<64x256xf32>, vector<8x256xf32> -> vector<8x256xf32>
    %233 = arith.addf %231, %232 : vector<8x256xf32>
    %234 = vector.extract_strided_slice %233 {offsets = [0, 0], sizes = [8, 64], strides = [1, 1]} : vector<8x256xf32> to vector<8x64xf32>
    %235 = arith.negf %234 : vector<8x64xf32>
    %236 = math.exp %235 : vector<8x64xf32>
    %cst_72 = arith.constant 1.000000e+00 : f32
    %237 = vector.broadcast %cst_72 : f32 to vector<8x64xf32>
    %238 = arith.addf %237, %236 : vector<8x64xf32>
    %239 = arith.divf %237, %238 : vector<8x64xf32>
    %240 = vector.extract_strided_slice %233 {offsets = [0, 64], sizes = [8, 64], strides = [1, 1]} : vector<8x256xf32> to vector<8x64xf32>
    %241 = arith.negf %240 : vector<8x64xf32>
    %242 = math.exp %241 : vector<8x64xf32>
    %cst_73 = arith.constant 1.000000e+00 : f32
    %243 = vector.broadcast %cst_73 : f32 to vector<8x64xf32>
    %244 = arith.addf %243, %242 : vector<8x64xf32>
    %245 = arith.divf %243, %244 : vector<8x64xf32>
    %246 = vector.extract_strided_slice %233 {offsets = [0, 128], sizes = [8, 64], strides = [1, 1]} : vector<8x256xf32> to vector<8x64xf32>
    %247 = math.tanh %246 : vector<8x64xf32>
    %248 = vector.extract_strided_slice %233 {offsets = [0, 192], sizes = [8, 64], strides = [1, 1]} : vector<8x256xf32> to vector<8x64xf32>
    %249 = arith.negf %248 : vector<8x64xf32>
    %250 = math.exp %249 : vector<8x64xf32>
    %cst_74 = arith.constant 1.000000e+00 : f32
    %251 = vector.broadcast %cst_74 : f32 to vector<8x64xf32>
    %252 = arith.addf %251, %250 : vector<8x64xf32>
    %253 = arith.divf %251, %252 : vector<8x64xf32>
    %254 = arith.mulf %245, %219 : vector<8x64xf32>
    %255 = arith.mulf %239, %247 : vector<8x64xf32>
    %256 = arith.addf %254, %255 : vector<8x64xf32>
    %257 = math.tanh %256 : vector<8x64xf32>
    %258 = arith.mulf %253, %257 : vector<8x64xf32>
    %c5_i32 = arith.constant 5 : i32
    %259 = arith.index_cast %c5_i32 : i32 to index
    %c0_75 = arith.constant 0 : index
    %c0_76 = arith.constant 0 : index
    %260 = vector.load %arg10[%259, %c0_75, %c0_76] : memref<8x8x256xf32, #tpu.memory_space<vmem>>, vector<1x8x256xf32>
    %261 = vector.shape_cast %260 : vector<1x8x256xf32> to vector<8x256xf32>
    %c7_i32_77 = arith.constant 7 : i32
    %262 = arith.subi %c7_i32_77, %c5_i32 : i32
    %263 = arith.index_cast %262 : i32 to index
    %c0_78 = arith.constant 0 : index
    %c0_79 = arith.constant 0 : index
    %264 = vector.load %arg10[%263, %c0_78, %c0_79] : memref<8x8x256xf32, #tpu.memory_space<vmem>>, vector<1x8x256xf32>
    %265 = vector.shape_cast %264 : vector<1x8x256xf32> to vector<8x256xf32>
    %266 = vector.shape_cast %71 : vector<1x256xi1> to vector<1x256xi1>
    %267 = vector.broadcast %266 : vector<1x256xi1> to vector<8x256xi1>
    %268 = arith.select %267, %261, %265 : vector<8x256xi1>, vector<8x256xf32>
    %cst_80 = arith.constant dense<0.000000e+00> : vector<8x256xf32>
    %269 = tpu.matmul %258, %1, %cst_80 {dimension_numbers = #tpu.dot_dimension_numbers<[1], [0], [0], [1], [0, 0, 1, 1], [], []>} : vector<8x64xf32>, vector<64x256xf32>, vector<8x256xf32> -> vector<8x256xf32>
    %270 = arith.addf %268, %269 : vector<8x256xf32>
    %271 = vector.extract_strided_slice %270 {offsets = [0, 0], sizes = [8, 64], strides = [1, 1]} : vector<8x256xf32> to vector<8x64xf32>
    %272 = arith.negf %271 : vector<8x64xf32>
    %273 = math.exp %272 : vector<8x64xf32>
    %cst_81 = arith.constant 1.000000e+00 : f32
    %274 = vector.broadcast %cst_81 : f32 to vector<8x64xf32>
    %275 = arith.addf %274, %273 : vector<8x64xf32>
    %276 = arith.divf %274, %275 : vector<8x64xf32>
    %277 = vector.extract_strided_slice %270 {offsets = [0, 64], sizes = [8, 64], strides = [1, 1]} : vector<8x256xf32> to vector<8x64xf32>
    %278 = arith.negf %277 : vector<8x64xf32>
    %279 = math.exp %278 : vector<8x64xf32>
    %cst_82 = arith.constant 1.000000e+00 : f32
    %280 = vector.broadcast %cst_82 : f32 to vector<8x64xf32>
    %281 = arith.addf %280, %279 : vector<8x64xf32>
    %282 = arith.divf %280, %281 : vector<8x64xf32>
    %283 = vector.extract_strided_slice %270 {offsets = [0, 128], sizes = [8, 64], strides = [1, 1]} : vector<8x256xf32> to vector<8x64xf32>
    %284 = math.tanh %283 : vector<8x64xf32>
    %285 = vector.extract_strided_slice %270 {offsets = [0, 192], sizes = [8, 64], strides = [1, 1]} : vector<8x256xf32> to vector<8x64xf32>
    %286 = arith.negf %285 : vector<8x64xf32>
    %287 = math.exp %286 : vector<8x64xf32>
    %cst_83 = arith.constant 1.000000e+00 : f32
    %288 = vector.broadcast %cst_83 : f32 to vector<8x64xf32>
    %289 = arith.addf %288, %287 : vector<8x64xf32>
    %290 = arith.divf %288, %289 : vector<8x64xf32>
    %291 = arith.mulf %282, %256 : vector<8x64xf32>
    %292 = arith.mulf %276, %284 : vector<8x64xf32>
    %293 = arith.addf %291, %292 : vector<8x64xf32>
    %294 = math.tanh %293 : vector<8x64xf32>
    %295 = arith.mulf %290, %294 : vector<8x64xf32>
    %c6_i32 = arith.constant 6 : i32
    %296 = arith.index_cast %c6_i32 : i32 to index
    %c0_84 = arith.constant 0 : index
    %c0_85 = arith.constant 0 : index
    %297 = vector.load %arg10[%296, %c0_84, %c0_85] : memref<8x8x256xf32, #tpu.memory_space<vmem>>, vector<1x8x256xf32>
    %298 = vector.shape_cast %297 : vector<1x8x256xf32> to vector<8x256xf32>
    %c7_i32_86 = arith.constant 7 : i32
    %299 = arith.subi %c7_i32_86, %c6_i32 : i32
    %300 = arith.index_cast %299 : i32 to index
    %c0_87 = arith.constant 0 : index
    %c0_88 = arith.constant 0 : index
    %301 = vector.load %arg10[%300, %c0_87, %c0_88] : memref<8x8x256xf32, #tpu.memory_space<vmem>>, vector<1x8x256xf32>
    %302 = vector.shape_cast %301 : vector<1x8x256xf32> to vector<8x256xf32>
    %303 = vector.shape_cast %71 : vector<1x256xi1> to vector<1x256xi1>
    %304 = vector.broadcast %303 : vector<1x256xi1> to vector<8x256xi1>
    %305 = arith.select %304, %298, %302 : vector<8x256xi1>, vector<8x256xf32>
    %cst_89 = arith.constant dense<0.000000e+00> : vector<8x256xf32>
    %306 = tpu.matmul %295, %1, %cst_89 {dimension_numbers = #tpu.dot_dimension_numbers<[1], [0], [0], [1], [0, 0, 1, 1], [], []>} : vector<8x64xf32>, vector<64x256xf32>, vector<8x256xf32> -> vector<8x256xf32>
    %307 = arith.addf %305, %306 : vector<8x256xf32>
    %308 = vector.extract_strided_slice %307 {offsets = [0, 0], sizes = [8, 64], strides = [1, 1]} : vector<8x256xf32> to vector<8x64xf32>
    %309 = arith.negf %308 : vector<8x64xf32>
    %310 = math.exp %309 : vector<8x64xf32>
    %cst_90 = arith.constant 1.000000e+00 : f32
    %311 = vector.broadcast %cst_90 : f32 to vector<8x64xf32>
    %312 = arith.addf %311, %310 : vector<8x64xf32>
    %313 = arith.divf %311, %312 : vector<8x64xf32>
    %314 = vector.extract_strided_slice %307 {offsets = [0, 64], sizes = [8, 64], strides = [1, 1]} : vector<8x256xf32> to vector<8x64xf32>
    %315 = arith.negf %314 : vector<8x64xf32>
    %316 = math.exp %315 : vector<8x64xf32>
    %cst_91 = arith.constant 1.000000e+00 : f32
    %317 = vector.broadcast %cst_91 : f32 to vector<8x64xf32>
    %318 = arith.addf %317, %316 : vector<8x64xf32>
    %319 = arith.divf %317, %318 : vector<8x64xf32>
    %320 = vector.extract_strided_slice %307 {offsets = [0, 128], sizes = [8, 64], strides = [1, 1]} : vector<8x256xf32> to vector<8x64xf32>
    %321 = math.tanh %320 : vector<8x64xf32>
    %322 = vector.extract_strided_slice %307 {offsets = [0, 192], sizes = [8, 64], strides = [1, 1]} : vector<8x256xf32> to vector<8x64xf32>
    %323 = arith.negf %322 : vector<8x64xf32>
    %324 = math.exp %323 : vector<8x64xf32>
    %cst_92 = arith.constant 1.000000e+00 : f32
    %325 = vector.broadcast %cst_92 : f32 to vector<8x64xf32>
    %326 = arith.addf %325, %324 : vector<8x64xf32>
    %327 = arith.divf %325, %326 : vector<8x64xf32>
    %328 = arith.mulf %319, %293 : vector<8x64xf32>
    %329 = arith.mulf %313, %321 : vector<8x64xf32>
    %330 = arith.addf %328, %329 : vector<8x64xf32>
    %331 = math.tanh %330 : vector<8x64xf32>
    %332 = arith.mulf %327, %331 : vector<8x64xf32>
    %c7_i32_93 = arith.constant 7 : i32
    %333 = arith.index_cast %c7_i32_93 : i32 to index
    %c0_94 = arith.constant 0 : index
    %c0_95 = arith.constant 0 : index
    %334 = vector.load %arg10[%333, %c0_94, %c0_95] : memref<8x8x256xf32, #tpu.memory_space<vmem>>, vector<1x8x256xf32>
    %335 = vector.shape_cast %334 : vector<1x8x256xf32> to vector<8x256xf32>
    %c7_i32_96 = arith.constant 7 : i32
    %336 = arith.subi %c7_i32_96, %c7_i32_93 : i32
    %337 = arith.index_cast %336 : i32 to index
    %c0_97 = arith.constant 0 : index
    %c0_98 = arith.constant 0 : index
    %338 = vector.load %arg10[%337, %c0_97, %c0_98] : memref<8x8x256xf32, #tpu.memory_space<vmem>>, vector<1x8x256xf32>
    %339 = vector.shape_cast %338 : vector<1x8x256xf32> to vector<8x256xf32>
    %340 = vector.shape_cast %71 : vector<1x256xi1> to vector<1x256xi1>
    %341 = vector.broadcast %340 : vector<1x256xi1> to vector<8x256xi1>
    %342 = arith.select %341, %335, %339 : vector<8x256xi1>, vector<8x256xf32>
    %cst_99 = arith.constant dense<0.000000e+00> : vector<8x256xf32>
    %343 = tpu.matmul %332, %1, %cst_99 {dimension_numbers = #tpu.dot_dimension_numbers<[1], [0], [0], [1], [0, 0, 1, 1], [], []>} : vector<8x64xf32>, vector<64x256xf32>, vector<8x256xf32> -> vector<8x256xf32>
    %344 = arith.addf %342, %343 : vector<8x256xf32>
    %345 = vector.extract_strided_slice %344 {offsets = [0, 0], sizes = [8, 64], strides = [1, 1]} : vector<8x256xf32> to vector<8x64xf32>
    %346 = arith.negf %345 : vector<8x64xf32>
    %347 = math.exp %346 : vector<8x64xf32>
    %cst_100 = arith.constant 1.000000e+00 : f32
    %348 = vector.broadcast %cst_100 : f32 to vector<8x64xf32>
    %349 = arith.addf %348, %347 : vector<8x64xf32>
    %350 = arith.divf %348, %349 : vector<8x64xf32>
    %351 = vector.extract_strided_slice %344 {offsets = [0, 64], sizes = [8, 64], strides = [1, 1]} : vector<8x256xf32> to vector<8x64xf32>
    %352 = arith.negf %351 : vector<8x64xf32>
    %353 = math.exp %352 : vector<8x64xf32>
    %cst_101 = arith.constant 1.000000e+00 : f32
    %354 = vector.broadcast %cst_101 : f32 to vector<8x64xf32>
    %355 = arith.addf %354, %353 : vector<8x64xf32>
    %356 = arith.divf %354, %355 : vector<8x64xf32>
    %357 = vector.extract_strided_slice %344 {offsets = [0, 128], sizes = [8, 64], strides = [1, 1]} : vector<8x256xf32> to vector<8x64xf32>
    %358 = math.tanh %357 : vector<8x64xf32>
    %359 = vector.extract_strided_slice %344 {offsets = [0, 192], sizes = [8, 64], strides = [1, 1]} : vector<8x256xf32> to vector<8x64xf32>
    %360 = arith.negf %359 : vector<8x64xf32>
    %361 = math.exp %360 : vector<8x64xf32>
    %cst_102 = arith.constant 1.000000e+00 : f32
    %362 = vector.broadcast %cst_102 : f32 to vector<8x64xf32>
    %363 = arith.addf %362, %361 : vector<8x64xf32>
    %364 = arith.divf %362, %363 : vector<8x64xf32>
    %365 = arith.mulf %356, %330 : vector<8x64xf32>
    %366 = arith.mulf %350, %358 : vector<8x64xf32>
    %367 = arith.addf %365, %366 : vector<8x64xf32>
    %368 = math.tanh %367 : vector<8x64xf32>
    %369 = arith.mulf %364, %368 : vector<8x64xf32>
    %c8_i32 = arith.constant 8 : i32
    %370 = vector.extract_strided_slice %369 {offsets = [0, 0], sizes = [8, 32], strides = [1, 1]} : vector<8x64xf32> to vector<8x32xf32>
    %371 = vector.extract_strided_slice %369 {offsets = [0, 32], sizes = [8, 32], strides = [1, 1]} : vector<8x64xf32> to vector<8x32xf32>
    %372 = arith.addf %370, %371 : vector<8x32xf32>
    %c0_103 = arith.constant 0 : index
    %c0_104 = arith.constant 0 : index
    %373 = vector.load %arg5[%c0_103, %c0_104] : memref<32x16xf32, #tpu.memory_space<vmem>>, vector<32x16xf32>
    %cst_105 = arith.constant dense<0.000000e+00> : vector<8x16xf32>
    %374 = tpu.matmul %372, %373, %cst_105 {dimension_numbers = #tpu.dot_dimension_numbers<[1], [0], [0], [1], [0, 0, 1, 1], [], []>} : vector<8x32xf32>, vector<32x16xf32>, vector<8x16xf32> -> vector<8x16xf32>
    %c0_106 = arith.constant 0 : index
    %c0_107 = arith.constant 0 : index
    %375 = vector.load %arg6[%c0_106, %c0_107] : memref<1x16xf32, #tpu.memory_space<vmem>>, vector<1x16xf32>
    %376 = vector.broadcast %375 : vector<1x16xf32> to vector<8x16xf32>
    %377 = arith.addf %374, %376 : vector<8x16xf32>
    %cst_108 = arith.constant 0.000000e+00 : f32
    %378 = vector.broadcast %cst_108 : f32 to vector<8x16xf32>
    %379 = arith.maximumf %377, %378 : vector<8x16xf32>
    %c0_109 = arith.constant 0 : index
    %c0_110 = arith.constant 0 : index
    %380 = vector.load %arg7[%c0_109, %c0_110] : memref<16x3xf32, #tpu.memory_space<vmem>>, vector<16x3xf32>
    %cst_111 = arith.constant dense<0.000000e+00> : vector<8x3xf32>
    %381 = tpu.matmul %379, %380, %cst_111 {dimension_numbers = #tpu.dot_dimension_numbers<[1], [0], [0], [1], [0, 0, 1, 1], [], []>} : vector<8x16xf32>, vector<16x3xf32>, vector<8x3xf32> -> vector<8x3xf32>
    %c0_112 = arith.constant 0 : index
    %c0_113 = arith.constant 0 : index
    %382 = vector.load %arg8[%c0_112, %c0_113] : memref<1x3xf32, #tpu.memory_space<vmem>>, vector<1x3xf32>
    %383 = vector.broadcast %382 : vector<1x3xf32> to vector<8x3xf32>
    %384 = arith.addf %381, %383 : vector<8x3xf32>
    %385 = arith.mulf %384, %384 : vector<8x3xf32>
    %cst_114 = arith.constant dense<0.000000e+00> : vector<8xf32>
    %386 = vector.multi_reduction <add>, %385, %cst_114 [1] : vector<8x3xf32> to vector<8xf32>
    %387 = vector.shape_cast %386 : vector<8xf32> to vector<8x1xf32>
    %388 = math.sqrt %387 : vector<8x1xf32>
    %cst_115 = arith.constant 1.000000e-16 : f32
    %389 = vector.broadcast %cst_115 : f32 to vector<8x1xf32>
    %390 = arith.addf %388, %389 : vector<8x1xf32>
    %391 = vector.broadcast %390 : vector<8x1xf32> to vector<8x3xf32>
    %392 = arith.divf %384, %391 : vector<8x3xf32>
    %c0_116 = arith.constant 0 : index
    %c0_117 = arith.constant 0 : index
    %393 = vector.load %arg9[%c0_116, %c0_117] : memref<8x3xf32, #tpu.memory_space<vmem>>, vector<8x3xf32>
    tpu.vector_store %arg9[%c0_116, %c0_117], %392 {strides = array<i32>} : memref<8x3xf32, #tpu.memory_space<vmem>>, vector<8x3xf32>,
    return
  }
  func.func @transform_0(%arg0: i32) -> (i32, i32) {
    %c0_i32 = arith.constant 0 : i32
    %c0_i32_0 = arith.constant 0 : i32
    return %arg0, %c0_i32 : i32, i32
  }
  func.func @transform_1(%arg0: i32) -> (i32, i32) {
    %c0_i32 = arith.constant 0 : i32
    %c0_i32_0 = arith.constant 0 : i32
    %c0_i32_1 = arith.constant 0 : i32
    return %c0_i32, %c0_i32_0 : i32, i32
  }
  func.func @transform_2(%arg0: i32) -> (i32, i32) {
    %c0_i32 = arith.constant 0 : i32
    %c0_i32_0 = arith.constant 0 : i32
    %c0_i32_1 = arith.constant 0 : i32
    return %c0_i32, %c0_i32_0 : i32, i32
  }
  func.func @transform_3(%arg0: i32) -> (i32, i32) {
    %c0_i32 = arith.constant 0 : i32
    %c0_i32_0 = arith.constant 0 : i32
    %c0_i32_1 = arith.constant 0 : i32
    return %c0_i32, %c0_i32_0 : i32, i32
  }
  func.func @transform_4(%arg0: i32) -> (i32, i32) {
    %c0_i32 = arith.constant 0 : i32
    %c0_i32_0 = arith.constant 0 : i32
    %c0_i32_1 = arith.constant 0 : i32
    return %c0_i32, %c0_i32_0 : i32, i32
  }
  func.func @transform_5(%arg0: i32) -> (i32, i32) {
    %c0_i32 = arith.constant 0 : i32
    %c0_i32_0 = arith.constant 0 : i32
    %c0_i32_1 = arith.constant 0 : i32
    return %c0_i32, %c0_i32_0 : i32, i32
  }
  func.func @transform_6(%arg0: i32) -> (i32, i32) {
    %c0_i32 = arith.constant 0 : i32
    %c0_i32_0 = arith.constant 0 : i32
    %c0_i32_1 = arith.constant 0 : i32
    return %c0_i32, %c0_i32_0 : i32, i32
  }
  func.func @transform_7(%arg0: i32) -> (i32, i32) {
    %c0_i32 = arith.constant 0 : i32
    %c0_i32_0 = arith.constant 0 : i32
    %c0_i32_1 = arith.constant 0 : i32
    return %c0_i32, %c0_i32_0 : i32, i32
  }
  func.func @transform_8(%arg0: i32) -> (i32, i32) {
    %c0_i32 = arith.constant 0 : i32
    %c0_i32_0 = arith.constant 0 : i32
    return %arg0, %c0_i32 : i32, i32
  }
}

</mosaic_0001>

<llo_original>
// kernel: tpu_custom_call.1
$region0: #{tpu_custom_call.1}
  #allocation0 [shape = 'u32[]', space=smem, size = 0x4, offset = 0x4, fixed_abs, tag = 'smem constant byte address 0x4 - core index']
  #allocation1 [shape = 'u32[144,128]{1,0:T(1,128)}', space=vmem, size = 0x12000, scoped, tag = 'internal scratch']
  #allocation2 [shape = 'f32[8,8,256]{2,1,0:T(8,128)}', space=vmem, size = 0x10000, scoped, tag = 'scratch operand']
  %s0 = inlined_call_operand.vmem [shape: f32[8,24], index: 0, kind: input, shape index: {}]
  %s1 = inlined_call_operand.hbm [shape: f32[24,2048], index: 1, kind: input, shape index: {}]
  %s2 = inlined_call_operand.hbm [shape: f32[64,256], index: 2, kind: input, shape index: {}]
  %s3 = inlined_call_operand.vmem [shape: f32[1,256], index: 3, kind: input, shape index: {}]
  %s4 = inlined_call_operand.vmem [shape: f32[32,16], index: 4, kind: input, shape index: {}]
  %s5 = inlined_call_operand.vmem [shape: f32[1,16], index: 5, kind: input, shape index: {}]
  %s6 = inlined_call_operand.vmem [shape: f32[16,3], index: 6, kind: input, shape index: {}]
  %s7 = inlined_call_operand.vmem [shape: f32[1,3], index: 7, kind: input, shape index: {}]
  %s8 = inlined_call_operand.vmem [shape: f32[8,3], index: 8, kind: output, shape index: {}]
  %s9 = sld [smem:[#allocation0]]
  $region50: #{tpu_custom_call.1} parent=0
    _
  %s11 = ssub.s32 1, %s9
  %s12 = scalar_select 0, %s11, %s9
  $region1: #{tpu_custom_call.1} parent=0
    #allocation3 [shape = 'u8[196608]{0}', space=vmem, size = 0x30000, scoped, tag = 'input window, operand 1, single buffered']
    #allocation4 [shape = 's32[1]{0}', space=sflag, size = 0x4, scoped, tag = 'scoped memory for tpu_custom_call.1']
    #allocation5 [shape = 'u8[65536]{0}', space=vmem, size = 0x10000, scoped, tag = 'input window, operand 2, single buffered']
    #allocation6 [shape = 's32[1]{0}', space=sflag, size = 0x4, scoped, tag = 'scoped memory for tpu_custom_call.1']
    %13 = vsyncpa [#allocation4], 0
    %14 = vsyncpa [#allocation6], 0
    // Predicated region
    $region2: #{tpu_custom_call.1} parent=1 // pred_check
      _
    $region3: #{tpu_custom_call.1} parent=1 // pred_check_branch
      %16 = sbr.rel (0) target = $region5
    $region4: #{tpu_custom_call.1} parent=1 // pred_region
      _
    $region5: #{tpu_custom_call.1} parent=1 // pred_fallthru
      _
    // Predicated region
    $region6: #{tpu_custom_call.1} parent=1 // pred_check
      _
    $region7: #{tpu_custom_call.1} parent=1 // pred_check_branch
      %18 = sbr.rel (0) target = $region9
    $region8: #{tpu_custom_call.1} parent=1 // pred_region
      %s20 = ssub.s32 6144, 6144
      %21 = vsyncadd [#allocation4], %s20
      %s22 = sshll.u32 [#allocation3], 4
      %s23 = int_to_ptr.vmem [resolvable:$true] %s22
      %28 = dma.hbm_to_vmem [thread:$0]  %s1, 6144, %s23, [#allocation4], 2048, 2048, 128
    $region9: #{tpu_custom_call.1} parent=1 // pred_fallthru
      _
    // Predicated region
    $region10: #{tpu_custom_call.1} parent=1 // pred_check
      _
    $region11: #{tpu_custom_call.1} parent=1 // pred_check_branch
      %30 = sbr.rel (0) target = $region13
    $region12: #{tpu_custom_call.1} parent=1 // pred_region
      %s32 = ssub.s32 2048, 2048
      %33 = vsyncadd [#allocation6], %s32
      %s34 = sshll.u32 [#allocation5], 4
      %s35 = int_to_ptr.vmem [resolvable:$true] %s34
      %40 = dma.hbm_to_vmem [thread:$0]  %s2, 2048, %s35, [#allocation6], 256, 256, 16
    $region13: #{tpu_custom_call.1} parent=1 // pred_fallthru
      _
    // Predicated region
    $region14: #{tpu_custom_call.1} parent=1 // pred_check
      _
    $region15: #{tpu_custom_call.1} parent=1 // pred_check_branch
      %42 = sbr.rel (0) target = $region17
    $region16: #{tpu_custom_call.1} parent=1 // pred_region
      _
    $region17: #{tpu_custom_call.1} parent=1 // pred_fallthru
      _
    // Predicated region
    $region18: #{tpu_custom_call.1} parent=1 // pred_check
      _
    $region19: #{tpu_custom_call.1} parent=1 // pred_check_branch
      %44 = sbr.rel (0) target = $region21
    $region20: #{tpu_custom_call.1} parent=1 // pred_region
      _
    $region21: #{tpu_custom_call.1} parent=1 // pred_fallthru
      _
    // Predicated region
    $region22: #{tpu_custom_call.1} parent=1 // pred_check
      _
    $region23: #{tpu_custom_call.1} parent=1 // pred_check_branch
      %46 = sbr.rel (0) target = $region25
    $region24: #{tpu_custom_call.1} parent=1 // pred_region
      _
    $region25: #{tpu_custom_call.1} parent=1 // pred_fallthru
      _
    // Predicated region
    $region26: #{tpu_custom_call.1} parent=1 // pred_check
      _
    $region27: #{tpu_custom_call.1} parent=1 // pred_check_branch
      %48 = sbr.rel (0) target = $region29
    $region28: #{tpu_custom_call.1} parent=1 // pred_region
      _
    $region29: #{tpu_custom_call.1} parent=1 // pred_fallthru
      _
    // Predicated region
    $region30: #{tpu_custom_call.1} parent=1 // pred_check
      _
    $region31: #{tpu_custom_call.1} parent=1 // pred_check_branch
      %50 = sbr.rel (0) target = $region33
    $region32: #{tpu_custom_call.1} parent=1 // pred_region
      _
    $region33: #{tpu_custom_call.1} parent=1 // pred_fallthru
      _
    // Predicated region
    $region34: #{tpu_custom_call.1} parent=1 // pred_check
      _
    $region35: #{tpu_custom_call.1} parent=1 // pred_check_branch
      %52 = sbr.rel (0) target = $region37
    $region36: #{tpu_custom_call.1} parent=1 // pred_region
      %53 = dma.done [#allocation4], 6144
    $region37: #{tpu_custom_call.1} parent=1 // pred_fallthru
      _
    // Predicated region
    $region38: #{tpu_custom_call.1} parent=1 // pred_check
      _
    $region39: #{tpu_custom_call.1} parent=1 // pred_check_branch
      %55 = sbr.rel (0) target = $region41
    $region40: #{tpu_custom_call.1} parent=1 // pred_region
      %56 = dma.done [#allocation6], 2048
    $region41: #{tpu_custom_call.1} parent=1 // pred_fallthru
      _
    %v57 = vld [vmem:[%s0] sm:$0xff]
    %v58 = vld [vmem:[#allocation5] sm:$0xff]
    %v59 = vld [vmem:[#allocation5 + $0x8] sm:$0xff]
    %v60 = vld [vmem:[#allocation5 + $0x10] sm:$0xff]
    %v61 = vld [vmem:[#allocation5 + $0x18] sm:$0xff]
    %v62 = vld [vmem:[#allocation5 + $0x20] sm:$0xff]
    %v63 = vld [vmem:[#allocation5 + $0x28] sm:$0xff]
    %v64 = vld [vmem:[#allocation5 + $0x30] sm:$0xff]
    %v65 = vld [vmem:[#allocation5 + $0x38] sm:$0xff]
    %v66 = vld [vmem:[#allocation5 + $0x40] sm:$0xff]
    %v67 = vld [vmem:[#allocation5 + $0x48] sm:$0xff]
    %v68 = vld [vmem:[#allocation5 + $0x50] sm:$0xff]
    %v69 = vld [vmem:[#allocation5 + $0x58] sm:$0xff]
    %v70 = vld [vmem:[#allocation5 + $0x60] sm:$0xff]
    %v71 = vld [vmem:[#allocation5 + $0x68] sm:$0xff]
    %v72 = vld [vmem:[#allocation5 + $0x70] sm:$0xff]
    %v73 = vld [vmem:[#allocation5 + $0x78] sm:$0xff]
    %v74 = vld [vmem:[%s3] sm:$0x3]
    %v75 = vld [vmem:[#allocation3] sm:$0xff]
    %v76 = vld [vmem:[#allocation3 + $0x8] sm:$0xff]
    %v77 = vld [vmem:[#allocation3 + $0x10] sm:$0xff]
    %v78 = vld [vmem:[#allocation3 + $0x18] sm:$0xff]
    %v79 = vld [vmem:[#allocation3 + $0x20] sm:$0xff]
    %v80 = vld [vmem:[#allocation3 + $0x28] sm:$0xff]
    %v81 = vld [vmem:[#allocation3 + $0x30] sm:$0xff]
    %v82 = vld [vmem:[#allocation3 + $0x38] sm:$0xff]
    %v83 = vld [vmem:[#allocation3 + $0x40] sm:$0xff]
    %v84 = vld [vmem:[#allocation3 + $0x48] sm:$0xff]
    %v85 = vld [vmem:[#allocation3 + $0x50] sm:$0xff]
    %v86 = vld [vmem:[#allocation3 + $0x58] sm:$0xff]
    %v87 = vld [vmem:[#allocation3 + $0x60] sm:$0xff]
    %v88 = vld [vmem:[#allocation3 + $0x68] sm:$0xff]
    %v89 = vld [vmem:[#allocation3 + $0x70] sm:$0xff]
    %v90 = vld [vmem:[#allocation3 + $0x78] sm:$0xff]
    %v91 = vld [vmem:[#allocation3 + $0x80] sm:$0xff]
    %v92 = vld [vmem:[#allocation3 + $0x88] sm:$0xff]
    %v93 = vld [vmem:[#allocation3 + $0x90] sm:$0xff]
    %v94 = vld [vmem:[#allocation3 + $0x98] sm:$0xff]
    %v95 = vld [vmem:[#allocation3 + $0xa0] sm:$0xff]
    %v96 = vld [vmem:[#allocation3 + $0xa8] sm:$0xff]
    %v97 = vld [vmem:[#allocation3 + $0xb0] sm:$0xff]
    %v98 = vld [vmem:[#allocation3 + $0xb8] sm:$0xff]
    %v99 = vld [vmem:[#allocation3 + $0xc0] sm:$0xff]
    %v100 = vld [vmem:[#allocation3 + $0xc8] sm:$0xff]
    %v101 = vld [vmem:[#allocation3 + $0xd0] sm:$0xff]
    %v102 = vld [vmem:[#allocation3 + $0xd8] sm:$0xff]
    %v103 = vld [vmem:[#allocation3 + $0xe0] sm:$0xff]
    %v104 = vld [vmem:[#allocation3 + $0xe8] sm:$0xff]
    %v105 = vld [vmem:[#allocation3 + $0xf0] sm:$0xff]
    %v106 = vld [vmem:[#allocation3 + $0xf8] sm:$0xff]
    %v107 = vld [vmem:[#allocation3 + $0x100] sm:$0xff]
    %v108 = vld [vmem:[#allocation3 + $0x108] sm:$0xff]
    %v109 = vld [vmem:[#allocation3 + $0x110] sm:$0xff]
    %v110 = vld [vmem:[#allocation3 + $0x118] sm:$0xff]
    %v111 = vld [vmem:[#allocation3 + $0x120] sm:$0xff]
    %v112 = vld [vmem:[#allocation3 + $0x128] sm:$0xff]
    %v113 = vld [vmem:[#allocation3 + $0x130] sm:$0xff]
    %v114 = vld [vmem:[#allocation3 + $0x138] sm:$0xff]
    %v115 = vld [vmem:[#allocation3 + $0x140] sm:$0xff]
    %v116 = vld [vmem:[#allocation3 + $0x148] sm:$0xff]
    %v117 = vld [vmem:[#allocation3 + $0x150] sm:$0xff]
    %v118 = vld [vmem:[#allocation3 + $0x158] sm:$0xff]
    %v119 = vld [vmem:[#allocation3 + $0x160] sm:$0xff]
    %v120 = vld [vmem:[#allocation3 + $0x168] sm:$0xff]
    %v121 = vld [vmem:[#allocation3 + $0x170] sm:$0xff]
    %v122 = vld [vmem:[#allocation3 + $0x178] sm:$0xff]
    %vm123 = vcmask 195584
    %v125 = vsel %vm123, %v57, 0
    %127 = vmatprep.subr.mxu0 0.0
    %128 = vmatpush1.msra.mxu0 0.0
    %129 = vmatprep.subr.mxu0 0.0
    %130 = vmatpush1.msra.mxu0 0.0
    %131 = vmatprep.subr.mxu0 0.0
    %132 = vmatpush1.msra.mxu0 0.0
    %133 = vmatprep.subr.mxu0 0.0
    %134 = vmatpush1.msra.mxu0 0.0
    %135 = vmatprep.subr.mxu0 0.0
    %136 = vmatpush1.msra.mxu0 0.0
    %137 = vmatprep.subr.mxu0 0.0
    %138 = vmatpush1.msra.mxu0 0.0
    %139 = vmatprep.subr.mxu0 0.0
    %140 = vmatpush1.msra.mxu0 0.0
    %141 = vmatprep.subr.mxu0 0.0
    %142 = vmatpush1.msra.mxu0 0.0
    %143 = vmatprep.subr.mxu0 0.0
    %144 = vmatpush1.msra.mxu0 0.0
    %145 = vmatprep.subr.mxu0 0.0
    %146 = vmatpush1.msra.mxu0 0.0
    %147 = vmatprep.subr.mxu0 0.0
    %148 = vmatpush1.msra.mxu0 0.0
    %149 = vmatprep.subr.mxu0 0.0
    %150 = vmatpush1.msra.mxu0 0.0
    %151 = vmatprep.subr.mxu0 0.0
    %152 = vmatpush1.msra.mxu0 0.0
    %153 = vmatprep.subr.mxu0 %v108
    %154 = vmatpush1.msra.mxu0 %v107
    %155 = vmatprep.subr.mxu0 %v92
    %156 = vmatpush1.msra.mxu0 %v91
    %157 = vmatprep.subr.mxu0 %v76
    %158 = vmatpush1.msra.mxu0 %v75
    %159 = vmatprep.subr.mxu0 0.0
    %160 = vmatpush2.msra.mxu0 0.0
    %161 = vmatprep.subr.mxu0 0.0
    %162 = vmatpush2.msra.mxu0 0.0
    %163 = vmatprep.subr.mxu0 0.0
    %164 = vmatpush2.msra.mxu0 0.0
    %165 = vmatprep.subr.mxu0 0.0
    %166 = vmatpush2.msra.mxu0 0.0
    %167 = vmatprep.subr.mxu0 0.0
    %168 = vmatpush2.msra.mxu0 0.0
    %169 = vmatprep.subr.mxu0 0.0
    %170 = vmatpush2.msra.mxu0 0.0
    %171 = vmatprep.subr.mxu0 0.0
    %172 = vmatpush2.msra.mxu0 0.0
    %173 = vmatprep.subr.mxu0 0.0
    %174 = vmatpush2.msra.mxu0 0.0
    %175 = vmatprep.subr.mxu0 0.0
    %176 = vmatpush2.msra.mxu0 0.0
    %177 = vmatprep.subr.mxu0 0.0
    %178 = vmatpush2.msra.mxu0 0.0
    %179 = vmatprep.subr.mxu0 0.0
    %180 = vmatpush2.msra.mxu0 0.0
    %181 = vmatprep.subr.mxu0 0.0
    %182 = vmatpush2.msra.mxu0 0.0
    %183 = vmatprep.subr.mxu0 0.0
    %184 = vmatpush2.msra.mxu0 0.0
    %185 = vmatprep.subr.mxu0 0.0
    %186 = vmatpush2.msra.mxu0 0.0
    %187 = vmatprep.subr.mxu0 0.0
    %188 = vmatpush2.msra.mxu0 0.0
    %189 = vmatprep.subr.mxu0 0.0
    %190 = vmatpush2.msra.mxu0 0.0
    %191 = vmatprep.mubr.f32.mxu0 0.0
    %192 = vmatmul.mubr.f32.gmra.mxu0 %v125
    %v193 = vpop.f32.mrf.mxu0
    %v194 = vadd.f32 0.0, %v193
    %v195 = vpop.f32.mrf.mxu0
    %v196 = vadd.f32 0.0, %v195
    %197 = vdwg.mxu0
    %198 = vmatprep.subr.mxu0 0.0
    %199 = vmatpush1.msra.mxu0 0.0
    %200 = vmatprep.subr.mxu0 0.0
    %201 = vmatpush1.msra.mxu0 0.0
    %202 = vmatprep.subr.mxu0 0.0
    %203 = vmatpush1.msra.mxu0 0.0
    %204 = vmatprep.subr.mxu0 0.0
    %205 = vmatpush1.msra.mxu0 0.0
    %206 = vmatprep.subr.mxu0 0.0
    %207 = vmatpush1.msra.mxu0 0.0
    %208 = vmatprep.subr.mxu0 0.0
    %209 = vmatpush1.msra.mxu0 0.0
    %210 = vmatprep.subr.mxu0 0.0
    %211 = vmatpush1.msra.mxu0 0.0
    %212 = vmatprep.subr.mxu0 0.0
    %213 = vmatpush1.msra.mxu0 0.0
    %214 = vmatprep.subr.mxu0 0.0
    %215 = vmatpush1.msra.mxu0 0.0
    %216 = vmatprep.subr.mxu0 0.0
    %217 = vmatpush1.msra.mxu0 0.0
    %218 = vmatprep.subr.mxu0 0.0
    %219 = vmatpush1.msra.mxu0 0.0
    %220 = vmatprep.subr.mxu0 0.0
    %221 = vmatpush1.msra.mxu0 0.0
    %222 = vmatprep.subr.mxu0 0.0
    %223 = vmatpush1.msra.mxu0 0.0
    %224 = vmatprep.subr.mxu0 %v110
    %225 = vmatpush1.msra.mxu0 %v109
    %226 = vmatprep.subr.mxu0 %v94
    %227 = vmatpush1.msra.mxu0 %v93
    %228 = vmatprep.subr.mxu0 %v78
    %229 = vmatpush1.msra.mxu0 %v77
    %230 = vmatprep.subr.mxu0 0.0
    %231 = vmatpush2.msra.mxu0 0.0
    %232 = vmatprep.subr.mxu0 0.0
    %233 = vmatpush2.msra.mxu0 0.0
    %234 = vmatprep.subr.mxu0 0.0
    %235 = vmatpush2.msra.mxu0 0.0
    %236 = vmatprep.subr.mxu0 0.0
    %237 = vmatpush2.msra.mxu0 0.0
    %238 = vmatprep.subr.mxu0 0.0
    %239 = vmatpush2.msra.mxu0 0.0
    %240 = vmatprep.subr.mxu0 0.0
    %241 = vmatpush2.msra.mxu0 0.0
    %242 = vmatprep.subr.mxu0 0.0
    %243 = vmatpush2.msra.mxu0 0.0
    %244 = vmatprep.subr.mxu0 0.0
    %245 = vmatpush2.msra.mxu0 0.0
    %246 = vmatprep.subr.mxu0 0.0
    %247 = vmatpush2.msra.mxu0 0.0
    %248 = vmatprep.subr.mxu0 0.0
    %249 = vmatpush2.msra.mxu0 0.0
    %250 = vmatprep.subr.mxu0 0.0
    %251 = vmatpush2.msra.mxu0 0.0
    %252 = vmatprep.subr.mxu0 0.0
    %253 = vmatpush2.msra.mxu0 0.0
    %254 = vmatprep.subr.mxu0 0.0
    %255 = vmatpush2.msra.mxu0 0.0
    %256 = vmatprep.subr.mxu0 0.0
    %257 = vmatpush2.msra.mxu0 0.0
    %258 = vmatprep.subr.mxu0 0.0
    %259 = vmatpush2.msra.mxu0 0.0
    %260 = vmatprep.subr.mxu0 0.0
    %261 = vmatpush2.msra.mxu0 0.0
    %262 = vmatprep.mubr.f32.mxu0 0.0
    %263 = vmatmul.mubr.f32.gmra.mxu0 %v125
    %v264 = vpop.f32.mrf.mxu0
    %v265 = vadd.f32 0.0, %v264
    %v266 = vpop.f32.mrf.mxu0
    %v267 = vadd.f32 0.0, %v266
    %268 = vdwg.mxu0
    %269 = vmatprep.subr.mxu0 0.0
    %270 = vmatpush1.msra.mxu0 0.0
    %271 = vmatprep.subr.mxu0 0.0
    %272 = vmatpush1.msra.mxu0 0.0
    %273 = vmatprep.subr.mxu0 0.0
    %274 = vmatpush1.msra.mxu0 0.0
    %275 = vmatprep.subr.mxu0 0.0
    %276 = vmatpush1.msra.mxu0 0.0
    %277 = vmatprep.subr.mxu0 0.0
    %278 = vmatpush1.msra.mxu0 0.0
    %279 = vmatprep.subr.mxu0 0.0
    %280 = vmatpush1.msra.mxu0 0.0
    %281 = vmatprep.subr.mxu0 0.0
    %282 = vmatpush1.msra.mxu0 0.0
    %283 = vmatprep.subr.mxu0 0.0
    %284 = vmatpush1.msra.mxu0 0.0
    %285 = vmatprep.subr.mxu0 0.0
    %286 = vmatpush1.msra.mxu0 0.0
    %287 = vmatprep.subr.mxu0 0.0
    %288 = vmatpush1.msra.mxu0 0.0
    %289 = vmatprep.subr.mxu0 0.0
    %290 = vmatpush1.msra.mxu0 0.0
    %291 = vmatprep.subr.mxu0 0.0
    %292 = vmatpush1.msra.mxu0 0.0
    %293 = vmatprep.subr.mxu0 0.0
    %294 = vmatpush1.msra.mxu0 0.0
    %295 = vmatprep.subr.mxu0 %v112
    %296 = vmatpush1.msra.mxu0 %v111
    %297 = vmatprep.subr.mxu0 %v96
    %298 = vmatpush1.msra.mxu0 %v95
    %299 = vmatprep.subr.mxu0 %v80
    %300 = vmatpush1.msra.mxu0 %v79
    %301 = vmatprep.subr.mxu0 0.0
    %302 = vmatpush2.msra.mxu0 0.0
    %303 = vmatprep.subr.mxu0 0.0
    %304 = vmatpush2.msra.mxu0 0.0
    %305 = vmatprep.subr.mxu0 0.0
    %306 = vmatpush2.msra.mxu0 0.0
    %307 = vmatprep.subr.mxu0 0.0
    %308 = vmatpush2.msra.mxu0 0.0
    %309 = vmatprep.subr.mxu0 0.0
    %310 = vmatpush2.msra.mxu0 0.0
    %311 = vmatprep.subr.mxu0 0.0
    %312 = vmatpush2.msra.mxu0 0.0
    %313 = vmatprep.subr.mxu0 0.0
    %314 = vmatpush2.msra.mxu0 0.0
    %315 = vmatprep.subr.mxu0 0.0
    %316 = vmatpush2.msra.mxu0 0.0
    %317 = vmatprep.subr.mxu0 0.0
    %318 = vmatpush2.msra.mxu0 0.0
    %319 = vmatprep.subr.mxu0 0.0
    %320 = vmatpush2.msra.mxu0 0.0
    %321 = vmatprep.subr.mxu0 0.0
    %322 = vmatpush2.msra.mxu0 0.0
    %323 = vmatprep.subr.mxu0 0.0
    %324 = vmatpush2.msra.mxu0 0.0
    %325 = vmatprep.subr.mxu0 0.0
    %326 = vmatpush2.msra.mxu0 0.0
    %327 = vmatprep.subr.mxu0 0.0
    %328 = vmatpush2.msra.mxu0 0.0
    %329 = vmatprep.subr.mxu0 0.0
    %330 = vmatpush2.msra.mxu0 0.0
    %331 = vmatprep.subr.mxu0 0.0
    %332 = vmatpush2.msra.mxu0 0.0
    %333 = vmatprep.mubr.f32.mxu0 0.0
    %334 = vmatmul.mubr.f32.gmra.mxu0 %v125
    %v335 = vpop.f32.mrf.mxu0
    %v336 = vadd.f32 0.0, %v335
    %v337 = vpop.f32.mrf.mxu0
    %v338 = vadd.f32 0.0, %v337
    %339 = vdwg.mxu0
    %340 = vmatprep.subr.mxu0 0.0
    %341 = vmatpush1.msra.mxu0 0.0
    %342 = vmatprep.subr.mxu0 0.0
    %343 = vmatpush1.msra.mxu0 0.0
    %344 = vmatprep.subr.mxu0 0.0
    %345 = vmatpush1.msra.mxu0 0.0
    %346 = vmatprep.subr.mxu0 0.0
    %347 = vmatpush1.msra.mxu0 0.0
    %348 = vmatprep.subr.mxu0 0.0
    %349 = vmatpush1.msra.mxu0 0.0
    %350 = vmatprep.subr.mxu0 0.0
    %351 = vmatpush1.msra.mxu0 0.0
    %352 = vmatprep.subr.mxu0 0.0
    %353 = vmatpush1.msra.mxu0 0.0
    %354 = vmatprep.subr.mxu0 0.0
    %355 = vmatpush1.msra.mxu0 0.0
    %356 = vmatprep.subr.mxu0 0.0
    %357 = vmatpush1.msra.mxu0 0.0
    %358 = vmatprep.subr.mxu0 0.0
    %359 = vmatpush1.msra.mxu0 0.0
    %360 = vmatprep.subr.mxu0 0.0
    %361 = vmatpush1.msra.mxu0 0.0
    %362 = vmatprep.subr.mxu0 0.0
    %363 = vmatpush1.msra.mxu0 0.0
    %364 = vmatprep.subr.mxu0 0.0
    %365 = vmatpush1.msra.mxu0 0.0
    %366 = vmatprep.subr.mxu0 %v114
    %367 = vmatpush1.msra.mxu0 %v113
    %368 = vmatprep.subr.mxu0 %v98
    %369 = vmatpush1.msra.mxu0 %v97
    %370 = vmatprep.subr.mxu0 %v82
    %371 = vmatpush1.msra.mxu0 %v81
    %372 = vmatprep.subr.mxu0 0.0
    %373 = vmatpush2.msra.mxu0 0.0
    %374 = vmatprep.subr.mxu0 0.0
    %375 = vmatpush2.msra.mxu0 0.0
    %376 = vmatprep.subr.mxu0 0.0
    %377 = vmatpush2.msra.mxu0 0.0
    %378 = vmatprep.subr.mxu0 0.0
    %379 = vmatpush2.msra.mxu0 0.0
    %380 = vmatprep.subr.mxu0 0.0
    %381 = vmatpush2.msra.mxu0 0.0
    %382 = vmatprep.subr.mxu0 0.0
    %383 = vmatpush2.msra.mxu0 0.0
    %384 = vmatprep.subr.mxu0 0.0
    %385 = vmatpush2.msra.mxu0 0.0
    %386 = vmatprep.subr.mxu0 0.0
    %387 = vmatpush2.msra.mxu0 0.0
    %388 = vmatprep.subr.mxu0 0.0
    %389 = vmatpush2.msra.mxu0 0.0
    %390 = vmatprep.subr.mxu0 0.0
    %391 = vmatpush2.msra.mxu0 0.0
    %392 = vmatprep.subr.mxu0 0.0
    %393 = vmatpush2.msra.mxu0 0.0
    %394 = vmatprep.subr.mxu0 0.0
    %395 = vmatpush2.msra.mxu0 0.0
    %396 = vmatprep.subr.mxu0 0.0
    %397 = vmatpush2.msra.mxu0 0.0
    %398 = vmatprep.subr.mxu0 0.0
    %399 = vmatpush2.msra.mxu0 0.0
    %400 = vmatprep.subr.mxu0 0.0
    %401 = vmatpush2.msra.mxu0 0.0
    %402 = vmatprep.subr.mxu0 0.0
    %403 = vmatpush2.msra.mxu0 0.0
    %404 = vmatprep.mubr.f32.mxu0 0.0
    %405 = vmatmul.mubr.f32.gmra.mxu0 %v125
    %v406 = vpop.f32.mrf.mxu0
    %v407 = vadd.f32 0.0, %v406
    %v408 = vpop.f32.mrf.mxu0
    %v409 = vadd.f32 0.0, %v408
    %410 = vdwg.mxu0
    %411 = vmatprep.subr.mxu0 0.0
    %412 = vmatpush1.msra.mxu0 0.0
    %413 = vmatprep.subr.mxu0 0.0
    %414 = vmatpush1.msra.mxu0 0.0
    %415 = vmatprep.subr.mxu0 0.0
    %416 = vmatpush1.msra.mxu0 0.0
    %417 = vmatprep.subr.mxu0 0.0
    %418 = vmatpush1.msra.mxu0 0.0
    %419 = vmatprep.subr.mxu0 0.0
    %420 = vmatpush1.msra.mxu0 0.0
    %421 = vmatprep.subr.mxu0 0.0
    %422 = vmatpush1.msra.mxu0 0.0
    %423 = vmatprep.subr.mxu0 0.0
    %424 = vmatpush1.msra.mxu0 0.0
    %425 = vmatprep.subr.mxu0 0.0
    %426 = vmatpush1.msra.mxu0 0.0
    %427 = vmatprep.subr.mxu0 0.0
    %428 = vmatpush1.msra.mxu0 0.0
    %429 = vmatprep.subr.mxu0 0.0
    %430 = vmatpush1.msra.mxu0 0.0
    %431 = vmatprep.subr.mxu0 0.0
    %432 = vmatpush1.msra.mxu0 0.0
    %433 = vmatprep.subr.mxu0 0.0
    %434 = vmatpush1.msra.mxu0 0.0
    %435 = vmatprep.subr.mxu0 0.0
    %436 = vmatpush1.msra.mxu0 0.0
    %437 = vmatprep.subr.mxu0 %v116
    %438 = vmatpush1.msra.mxu0 %v115
    %439 = vmatprep.subr.mxu0 %v100
    %440 = vmatpush1.msra.mxu0 %v99
    %441 = vmatprep.subr.mxu0 %v84
    %442 = vmatpush1.msra.mxu0 %v83
    %443 = vmatprep.subr.mxu0 0.0
    %444 = vmatpush2.msra.mxu0 0.0
    %445 = vmatprep.subr.mxu0 0.0
    %446 = vmatpush2.msra.mxu0 0.0
    %447 = vmatprep.subr.mxu0 0.0
    %448 = vmatpush2.msra.mxu0 0.0
    %449 = vmatprep.subr.mxu0 0.0
    %450 = vmatpush2.msra.mxu0 0.0
    %451 = vmatprep.subr.mxu0 0.0
    %452 = vmatpush2.msra.mxu0 0.0
    %453 = vmatprep.subr.mxu0 0.0
    %454 = vmatpush2.msra.mxu0 0.0
    %455 = vmatprep.subr.mxu0 0.0
    %456 = vmatpush2.msra.mxu0 0.0
    %457 = vmatprep.subr.mxu0 0.0
    %458 = vmatpush2.msra.mxu0 0.0
    %459 = vmatprep.subr.mxu0 0.0
    %460 = vmatpush2.msra.mxu0 0.0
    %461 = vmatprep.subr.mxu0 0.0
    %462 = vmatpush2.msra.mxu0 0.0
    %463 = vmatprep.subr.mxu0 0.0
    %464 = vmatpush2.msra.mxu0 0.0
    %465 = vmatprep.subr.mxu0 0.0
    %466 = vmatpush2.msra.mxu0 0.0
    %467 = vmatprep.subr.mxu0 0.0
    %468 = vmatpush2.msra.mxu0 0.0
    %469 = vmatprep.subr.mxu0 0.0
    %470 = vmatpush2.msra.mxu0 0.0
    %471 = vmatprep.subr.mxu0 0.0
    %472 = vmatpush2.msra.mxu0 0.0
    %473 = vmatprep.subr.mxu0 0.0
    %474 = vmatpush2.msra.mxu0 0.0
    %475 = vmatprep.mubr.f32.mxu0 0.0
    %476 = vmatmul.mubr.f32.gmra.mxu0 %v125
    %v477 = vpop.f32.mrf.mxu0
    %v478 = vadd.f32 0.0, %v477
    %v479 = vpop.f32.mrf.mxu0
    %v480 = vadd.f32 0.0, %v479
    %481 = vdwg.mxu0
    %482 = vmatprep.subr.mxu0 0.0
    %483 = vmatpush1.msra.mxu0 0.0
    %484 = vmatprep.subr.mxu0 0.0
    %485 = vmatpush1.msra.mxu0 0.0
    %486 = vmatprep.subr.mxu0 0.0
    %487 = vmatpush1.msra.mxu0 0.0
    %488 = vmatprep.subr.mxu0 0.0
    %489 = vmatpush1.msra.mxu0 0.0
    %490 = vmatprep.subr.mxu0 0.0
    %491 = vmatpush1.msra.mxu0 0.0
    %492 = vmatprep.subr.mxu0 0.0
    %493 = vmatpush1.msra.mxu0 0.0
    %494 = vmatprep.subr.mxu0 0.0
    %495 = vmatpush1.msra.mxu0 0.0
    %496 = vmatprep.subr.mxu0 0.0
    %497 = vmatpush1.msra.mxu0 0.0
    %498 = vmatprep.subr.mxu0 0.0
    %499 = vmatpush1.msra.mxu0 0.0
    %500 = vmatprep.subr.mxu0 0.0
    %501 = vmatpush1.msra.mxu0 0.0
    %502 = vmatprep.subr.mxu0 0.0
    %503 = vmatpush1.msra.mxu0 0.0
    %504 = vmatprep.subr.mxu0 0.0
    %505 = vmatpush1.msra.mxu0 0.0
    %506 = vmatprep.subr.mxu0 0.0
    %507 = vmatpush1.msra.mxu0 0.0
    %508 = vmatprep.subr.mxu0 %v118
    %509 = vmatpush1.msra.mxu0 %v117
    %510 = vmatprep.subr.mxu0 %v102
    %511 = vmatpush1.msra.mxu0 %v101
    %512 = vmatprep.subr.mxu0 %v86
    %513 = vmatpush1.msra.mxu0 %v85
    %514 = vmatprep.subr.mxu0 0.0
    %515 = vmatpush2.msra.mxu0 0.0
    %516 = vmatprep.subr.mxu0 0.0
    %517 = vmatpush2.msra.mxu0 0.0
    %518 = vmatprep.subr.mxu0 0.0
    %519 = vmatpush2.msra.mxu0 0.0
    %520 = vmatprep.subr.mxu0 0.0
    %521 = vmatpush2.msra.mxu0 0.0
    %522 = vmatprep.subr.mxu0 0.0
    %523 = vmatpush2.msra.mxu0 0.0
    %524 = vmatprep.subr.mxu0 0.0
    %525 = vmatpush2.msra.mxu0 0.0
    %526 = vmatprep.subr.mxu0 0.0
    %527 = vmatpush2.msra.mxu0 0.0
    %528 = vmatprep.subr.mxu0 0.0
    %529 = vmatpush2.msra.mxu0 0.0
    %530 = vmatprep.subr.mxu0 0.0
    %531 = vmatpush2.msra.mxu0 0.0
    %532 = vmatprep.subr.mxu0 0.0
    %533 = vmatpush2.msra.mxu0 0.0
    %534 = vmatprep.subr.mxu0 0.0
    %535 = vmatpush2.msra.mxu0 0.0
    %536 = vmatprep.subr.mxu0 0.0
    %537 = vmatpush2.msra.mxu0 0.0
    %538 = vmatprep.subr.mxu0 0.0
    %539 = vmatpush2.msra.mxu0 0.0
    %540 = vmatprep.subr.mxu0 0.0
    %541 = vmatpush2.msra.mxu0 0.0
    %542 = vmatprep.subr.mxu0 0.0
    %543 = vmatpush2.msra.mxu0 0.0
    %544 = vmatprep.subr.mxu0 0.0
    %545 = vmatpush2.msra.mxu0 0.0
    %546 = vmatprep.mubr.f32.mxu0 0.0
    %547 = vmatmul.mubr.f32.gmra.mxu0 %v125
    %v548 = vpop.f32.mrf.mxu0
    %v549 = vadd.f32 0.0, %v548
    %v550 = vpop.f32.mrf.mxu0
    %v551 = vadd.f32 0.0, %v550
    %552 = vdwg.mxu0
    %553 = vmatprep.subr.mxu0 0.0
    %554 = vmatpush1.msra.mxu0 0.0
    %555 = vmatprep.subr.mxu0 0.0
    %556 = vmatpush1.msra.mxu0 0.0
    %557 = vmatprep.subr.mxu0 0.0
    %558 = vmatpush1.msra.mxu0 0.0
    %559 = vmatprep.subr.mxu0 0.0
    %560 = vmatpush1.msra.mxu0 0.0
    %561 = vmatprep.subr.mxu0 0.0
    %562 = vmatpush1.msra.mxu0 0.0
    %563 = vmatprep.subr.mxu0 0.0
    %564 = vmatpush1.msra.mxu0 0.0
    %565 = vmatprep.subr.mxu0 0.0
    %566 = vmatpush1.msra.mxu0 0.0
    %567 = vmatprep.subr.mxu0 0.0
    %568 = vmatpush1.msra.mxu0 0.0
    %569 = vmatprep.subr.mxu0 0.0
    %570 = vmatpush1.msra.mxu0 0.0
    %571 = vmatprep.subr.mxu0 0.0
    %572 = vmatpush1.msra.mxu0 0.0
    %573 = vmatprep.subr.mxu0 0.0
    %574 = vmatpush1.msra.mxu0 0.0
    %575 = vmatprep.subr.mxu0 0.0
    %576 = vmatpush1.msra.mxu0 0.0
    %577 = vmatprep.subr.mxu0 0.0
    %578 = vmatpush1.msra.mxu0 0.0
    %579 = vmatprep.subr.mxu0 %v120
    %580 = vmatpush1.msra.mxu0 %v119
    %581 = vmatprep.subr.mxu0 %v104
    %582 = vmatpush1.msra.mxu0 %v103
    %583 = vmatprep.subr.mxu0 %v88
    %584 = vmatpush1.msra.mxu0 %v87
    %585 = vmatprep.subr.mxu0 0.0
    %586 = vmatpush2.msra.mxu0 0.0
    %587 = vmatprep.subr.mxu0 0.0
    %588 = vmatpush2.msra.mxu0 0.0
    %589 = vmatprep.subr.mxu0 0.0
    %590 = vmatpush2.msra.mxu0 0.0
    %591 = vmatprep.subr.mxu0 0.0
    %592 = vmatpush2.msra.mxu0 0.0
    %593 = vmatprep.subr.mxu0 0.0
    %594 = vmatpush2.msra.mxu0 0.0
    %595 = vmatprep.subr.mxu0 0.0
    %596 = vmatpush2.msra.mxu0 0.0
    %597 = vmatprep.subr.mxu0 0.0
    %598 = vmatpush2.msra.mxu0 0.0
    %599 = vmatprep.subr.mxu0 0.0
    %600 = vmatpush2.msra.mxu0 0.0
    %601 = vmatprep.subr.mxu0 0.0
    %602 = vmatpush2.msra.mxu0 0.0
    %603 = vmatprep.subr.mxu0 0.0
    %604 = vmatpush2.msra.mxu0 0.0
    %605 = vmatprep.subr.mxu0 0.0
    %606 = vmatpush2.msra.mxu0 0.0
    %607 = vmatprep.subr.mxu0 0.0
    %608 = vmatpush2.msra.mxu0 0.0
    %609 = vmatprep.subr.mxu0 0.0
    %610 = vmatpush2.msra.mxu0 0.0
    %611 = vmatprep.subr.mxu0 0.0
    %612 = vmatpush2.msra.mxu0 0.0
    %613 = vmatprep.subr.mxu0 0.0
    %614 = vmatpush2.msra.mxu0 0.0
    %615 = vmatprep.subr.mxu0 0.0
    %616 = vmatpush2.msra.mxu0 0.0
    %617 = vmatprep.mubr.f32.mxu0 0.0
    %618 = vmatmul.mubr.f32.gmra.mxu0 %v125
    %v619 = vpop.f32.mrf.mxu0
    %v620 = vadd.f32 0.0, %v619
    %v621 = vpop.f32.mrf.mxu0
    %v622 = vadd.f32 0.0, %v621
    %623 = vdwg.mxu0
    %624 = vmatprep.subr.mxu0 0.0
    %625 = vmatpush1.msra.mxu0 0.0
    %626 = vmatprep.subr.mxu0 0.0
    %627 = vmatpush1.msra.mxu0 0.0
    %628 = vmatprep.subr.mxu0 0.0
    %629 = vmatpush1.msra.mxu0 0.0
    %630 = vmatprep.subr.mxu0 0.0
    %631 = vmatpush1.msra.mxu0 0.0
    %632 = vmatprep.subr.mxu0 0.0
    %633 = vmatpush1.msra.mxu0 0.0
    %634 = vmatprep.subr.mxu0 0.0
    %635 = vmatpush1.msra.mxu0 0.0
    %636 = vmatprep.subr.mxu0 0.0
    %637 = vmatpush1.msra.mxu0 0.0
    %638 = vmatprep.subr.mxu0 0.0
    %639 = vmatpush1.msra.mxu0 0.0
    %640 = vmatprep.subr.mxu0 0.0
    %641 = vmatpush1.msra.mxu0 0.0
    %642 = vmatprep.subr.mxu0 0.0
    %643 = vmatpush1.msra.mxu0 0.0
    %644 = vmatprep.subr.mxu0 0.0
    %645 = vmatpush1.msra.mxu0 0.0
    %646 = vmatprep.subr.mxu0 0.0
    %647 = vmatpush1.msra.mxu0 0.0
    %648 = vmatprep.subr.mxu0 0.0
    %649 = vmatpush1.msra.mxu0 0.0
    %650 = vmatprep.subr.mxu0 %v122
    %651 = vmatpush1.msra.mxu0 %v121
    %652 = vmatprep.subr.mxu0 %v106
    %653 = vmatpush1.msra.mxu0 %v105
    %654 = vmatprep.subr.mxu0 %v90
    %655 = vmatpush1.msra.mxu0 %v89
    %656 = vmatprep.subr.mxu0 0.0
    %657 = vmatpush2.msra.mxu0 0.0
    %658 = vmatprep.subr.mxu0 0.0
    %659 = vmatpush2.msra.mxu0 0.0
    %660 = vmatprep.subr.mxu0 0.0
    %661 = vmatpush2.msra.mxu0 0.0
    %662 = vmatprep.subr.mxu0 0.0
    %663 = vmatpush2.msra.mxu0 0.0
    %664 = vmatprep.subr.mxu0 0.0
    %665 = vmatpush2.msra.mxu0 0.0
    %666 = vmatprep.subr.mxu0 0.0
    %667 = vmatpush2.msra.mxu0 0.0
    %668 = vmatprep.subr.mxu0 0.0
    %669 = vmatpush2.msra.mxu0 0.0
    %670 = vmatprep.subr.mxu0 0.0
    %671 = vmatpush2.msra.mxu0 0.0
    %672 = vmatprep.subr.mxu0 0.0
    %673 = vmatpush2.msra.mxu0 0.0
    %674 = vmatprep.subr.mxu0 0.0
    %675 = vmatpush2.msra.mxu0 0.0
    %676 = vmatprep.subr.mxu0 0.0
    %677 = vmatpush2.msra.mxu0 0.0
    %678 = vmatprep.subr.mxu0 0.0
    %679 = vmatpush2.msra.mxu0 0.0
    %680 = vmatprep.subr.mxu0 0.0
    %681 = vmatpush2.msra.mxu0 0.0
    %682 = vmatprep.subr.mxu0 0.0
    %683 = vmatpush2.msra.mxu0 0.0
    %684 = vmatprep.subr.mxu0 0.0
    %685 = vmatpush2.msra.mxu0 0.0
    %686 = vmatprep.subr.mxu0 0.0
    %687 = vmatpush2.msra.mxu0 0.0
    %688 = vmatprep.mubr.f32.mxu0 0.0
    %689 = vmatmul.mubr.f32.gmra.mxu0 %v125
    %v690 = vpop.f32.mrf.mxu0
    %v691 = vadd.f32 0.0, %v690
    %v692 = vpop.f32.mrf.mxu0
    %v693 = vadd.f32 0.0, %v692
    %694 = vdwg.mxu0
    %v696 = vlaneseq
    %v697 = vshrl.u32 %v696, 7
    %v698 = vsub.s32 0, %v697
    %v699 = vrot.slane %v74, %v698
    %v700 = vlaneseq
    %v701 = vshrl.u32 %v700, 7
    %v702 = vsub.s32 1, %v701
    %v703 = vrot.slane %v74, %v702
    %v706 = vadd.f32 %v194, %v699
    %v707 = vadd.f32 %v196, %v703
    %708 = vst [vmem:[#allocation2] sm:$0xff] %v706
    %709 = vst [vmem:[#allocation2 + $0x8] sm:$0xff] %v707
    %v710 = vadd.f32 %v265, %v699
    %v711 = vadd.f32 %v267, %v703
    %s712 = scalar_lea.vmem [#allocation2], 16
    %713 = vst [vmem:[%s712] sm:$0xff] %v710
    %714 = vst [vmem:[%s712 + $0x8] sm:$0xff] %v711
    %v715 = vadd.f32 %v336, %v699
    %v716 = vadd.f32 %v338, %v703
    %s717 = scalar_lea.vmem [#allocation2], 32
    %718 = vst [vmem:[%s717] sm:$0xff] %v715
    %719 = vst [vmem:[%s717 + $0x8] sm:$0xff] %v716
    %v720 = vadd.f32 %v407, %v699
    %v721 = vadd.f32 %v409, %v703
    %s722 = scalar_lea.vmem [#allocation2], 48
    %723 = vst [vmem:[%s722] sm:$0xff] %v720
    %724 = vst [vmem:[%s722 + $0x8] sm:$0xff] %v721
    %v725 = vadd.f32 %v478, %v699
    %v726 = vadd.f32 %v480, %v703
    %s727 = scalar_lea.vmem [#allocation2], 64
    %728 = vst [vmem:[%s727] sm:$0xff] %v725
    %729 = vst [vmem:[%s727 + $0x8] sm:$0xff] %v726
    %v730 = vadd.f32 %v549, %v699
    %v731 = vadd.f32 %v551, %v703
    %s732 = scalar_lea.vmem [#allocation2], 80
    %733 = vst [vmem:[%s732] sm:$0xff] %v730
    %734 = vst [vmem:[%s732 + $0x8] sm:$0xff] %v731
    %v735 = vadd.f32 %v620, %v699
    %v736 = vadd.f32 %v622, %v703
    %s737 = scalar_lea.vmem [#allocation2], 96
    %738 = vst [vmem:[%s737] sm:$0xff] %v735
    %739 = vst [vmem:[%s737 + $0x8] sm:$0xff] %v736
    %v740 = vadd.f32 %v691, %v699
    %v741 = vadd.f32 %v693, %v703
    %s742 = scalar_lea.vmem [#allocation2], 112
    %743 = vst [vmem:[%s742] sm:$0xff] %v740
    %744 = vst [vmem:[%s742 + $0x8] sm:$0xff] %v741
    %v745 = vlaneseq
    %v746 = vand.u32 %v745, 127
    %v747 = vadd.s32 %v746, 128
    %vm748 = vcmp.lt.s32.totalorder %v746, 0
    %v749 = vsub.s32 0, %v746
    %v750 = vsel %vm748, %v749, %v746
    %v751 = vshrl.u32 %v750, 6
    %v752 = vand.u32 %v750, 63
    %v753 = vsub.s32 0, %v752
    %v754 = vsel %vm748, %v753, %v752
    %vm755 = vcmp.lt.s32.totalorder %v747, 0
    %v756 = vsub.s32 0, %v747
    %v757 = vsel %vm755, %v756, %v747
    %v758 = vshrl.u32 %v757, 6
    %v759 = vand.u32 %v757, 63
    %v760 = vsub.s32 0, %v759
    %v761 = vsel %vm755, %v760, %v759
    %vm762 = vcmp.ne.s32.totalorder %v754, 0
    %vm763 = vcmp.ne.s32.totalorder %v761, 0
    %vm764 = vcmp.lt.s32.totalorder %v754, 0
    %vm765 = vcmp.lt.s32.totalorder %v761, 0
    %vm766 = vmand %vm764, %vm762
    %vm767 = vmand %vm765, %vm763
    %v768 = vadd.s32 %v754, 64
    %v769 = vadd.s32 %v761, 64
    %v770 = vsel %vm766, %v768, %v754
    %v771 = vsel %vm767, %v769, %v761
    %vm772 = vcmp.lt.s32.totalorder %v770, 32
    %vm773 = vcmp.lt.s32.totalorder %v771, 32
    %v774 = vld [vmem:[#allocation2] sm:$0xff]
    %v775 = vld [vmem:[#allocation2 + $0x8] sm:$0xff]
    %v776 = vld [vmem:[%s742] sm:$0xff]
    %v777 = vld [vmem:[%s742 + $0x8] sm:$0xff]
    %v778 = vsel %vm772, 1, 0
    %v779 = vsel %vm773, 1, 0
    %vm780 = vcmp.eq.s32.totalorder %v778, 1
    %vm781 = vcmp.eq.s32.totalorder %v779, 1
    %v782 = vsel %vm780, %v774, %v776
    %v783 = vsel %vm781, %v775, %v777
    %vm784 = vcmask 523264
    %v786 = vsel %vm784, 0.0, 0
    %788 = vmatprep.subr.mxu0 0.0
    %789 = vmatpush1.msra.mxu0 0.0
    %790 = vmatprep.subr.mxu0 0.0
    %791 = vmatpush1.msra.mxu0 0.0
    %792 = vmatprep.subr.mxu0 0.0
    %793 = vmatpush1.msra.mxu0 0.0
    %794 = vmatprep.subr.mxu0 0.0
    %795 = vmatpush1.msra.mxu0 0.0
    %796 = vmatprep.subr.mxu0 0.0
    %797 = vmatpush1.msra.mxu0 0.0
    %798 = vmatprep.subr.mxu0 0.0
    %799 = vmatpush1.msra.mxu0 0.0
    %800 = vmatprep.subr.mxu0 0.0
    %801 = vmatpush1.msra.mxu0 0.0
    %802 = vmatprep.subr.mxu0 0.0
    %803 = vmatpush1.msra.mxu0 0.0
    %804 = vmatprep.subr.mxu0 %v73
    %805 = vmatpush1.msra.mxu0 %v72
    %806 = vmatprep.subr.mxu0 %v71
    %807 = vmatpush1.msra.mxu0 %v70
    %808 = vmatprep.subr.mxu0 %v69
    %809 = vmatpush1.msra.mxu0 %v68
    %810 = vmatprep.subr.mxu0 %v67
    %811 = vmatpush1.msra.mxu0 %v66
    %812 = vmatprep.subr.mxu0 %v65
    %813 = vmatpush1.msra.mxu0 %v64
    %814 = vmatprep.subr.mxu0 %v63
    %815 = vmatpush1.msra.mxu0 %v62
    %816 = vmatprep.subr.mxu0 %v61
    %817 = vmatpush1.msra.mxu0 %v60
    %818 = vmatprep.subr.mxu0 %v59
    %819 = vmatpush1.msra.mxu0 %v58
    %820 = vmatprep.subr.mxu0 0.0
    %821 = vmatpush2.msra.mxu0 0.0
    %822 = vmatprep.subr.mxu0 0.0
    %823 = vmatpush2.msra.mxu0 0.0
    %824 = vmatprep.subr.mxu0 0.0
    %825 = vmatpush2.msra.mxu0 0.0
    %826 = vmatprep.subr.mxu0 0.0
    %827 = vmatpush2.msra.mxu0 0.0
    %828 = vmatprep.subr.mxu0 0.0
    %829 = vmatpush2.msra.mxu0 0.0
    %830 = vmatprep.subr.mxu0 0.0
    %831 = vmatpush2.msra.mxu0 0.0
    %832 = vmatprep.subr.mxu0 0.0
    %833 = vmatpush2.msra.mxu0 0.0
    %834 = vmatprep.subr.mxu0 0.0
    %835 = vmatpush2.msra.mxu0 0.0
    %836 = vmatprep.subr.mxu0 0.0
    %837 = vmatpush2.msra.mxu0 0.0
    %838 = vmatprep.subr.mxu0 0.0
    %839 = vmatpush2.msra.mxu0 0.0
    %840 = vmatprep.subr.mxu0 0.0
    %841 = vmatpush2.msra.mxu0 0.0
    %842 = vmatprep.subr.mxu0 0.0
    %843 = vmatpush2.msra.mxu0 0.0
    %844 = vmatprep.subr.mxu0 0.0
    %845 = vmatpush2.msra.mxu0 0.0
    %846 = vmatprep.subr.mxu0 0.0
    %847 = vmatpush2.msra.mxu0 0.0
    %848 = vmatprep.subr.mxu0 0.0
    %849 = vmatpush2.msra.mxu0 0.0
    %850 = vmatprep.subr.mxu0 0.0
    %851 = vmatpush2.msra.mxu0 0.0
    %852 = vmatprep.mubr.f32.mxu0 0.0
    %853 = vmatmul.mubr.f32.gmra.mxu0 %v786
    %v854 = vpop.f32.mrf.mxu0
    %v855 = vadd.f32 0.0, %v854
    %v856 = vpop.f32.mrf.mxu0
    %v857 = vadd.f32 0.0, %v856
    %858 = vdwg.mxu0
    %v859 = vadd.f32 %v782, %v855
    %v860 = vadd.f32 %v783, %v857
    %v861 = vxor.u32 %v859, 2147483648
    %v862 = vmul.f32 %v861, 1.442695
    %v863 = vpow.pop %v862
    %v864 = vadd.f32 %v863, 1.0
    %v865 = vrcp.pop %v864
    %v866 = vmul.f32 1.0, %v865
    %v867 = vtanh.pop %v860
    %v868 = vxor.u32 %v860, 2147483648
    %v869 = vmul.f32 %v868, 1.442695
    %v870 = vpow.pop %v869
    %v871 = vadd.f32 %v870, 1.0
    %v872 = vrcp.pop %v871
    %v873 = vmul.f32 1.0, %v872
    %v874 = vmul.f32 %v866, 0.0
    %v875 = vmul.f32 %v866, %v867
    %877 = vrot.lane.b32.xlu0 %v875, 64
    %v878 = vpop.permute.xlu0 %877
    %v880 = vadd.f32 %v874, %v878
    %v881 = vtanh.pop %v880
    %v882 = vmul.f32 %v873, %v881
    %v883 = vld [vmem:[%s712] sm:$0xff]
    %v884 = vld [vmem:[%s712 + $0x8] sm:$0xff]
    %v885 = vld [vmem:[%s737] sm:$0xff]
    %v886 = vld [vmem:[%s737 + $0x8] sm:$0xff]
    %v887 = vsel %vm780, %v883, %v885
    %v888 = vsel %vm781, %v884, %v886
    %890 = vrot.lane.b32.xlu0 %v882, 64
    %v891 = vpop.permute.xlu0 %890
    %v892 = vsel %vm784, %v891, 0
    %894 = vmatprep.subr.mxu0 0.0
    %895 = vmatpush1.msra.mxu0 0.0
    %896 = vmatprep.subr.mxu0 0.0
    %897 = vmatpush1.msra.mxu0 0.0
    %898 = vmatprep.subr.mxu0 0.0
    %899 = vmatpush1.msra.mxu0 0.0
    %900 = vmatprep.subr.mxu0 0.0
    %901 = vmatpush1.msra.mxu0 0.0
    %902 = vmatprep.subr.mxu0 0.0
    %903 = vmatpush1.msra.mxu0 0.0
    %904 = vmatprep.subr.mxu0 0.0
    %905 = vmatpush1.msra.mxu0 0.0
    %906 = vmatprep.subr.mxu0 0.0
    %907 = vmatpush1.msra.mxu0 0.0
    %908 = vmatprep.subr.mxu0 0.0
    %909 = vmatpush1.msra.mxu0 0.0
    %910 = vmatprep.subr.mxu0 %v73
    %911 = vmatpush1.msra.mxu0 %v72
    %912 = vmatprep.subr.mxu0 %v71
    %913 = vmatpush1.msra.mxu0 %v70
    %914 = vmatprep.subr.mxu0 %v69
    %915 = vmatpush1.msra.mxu0 %v68
    %916 = vmatprep.subr.mxu0 %v67
    %917 = vmatpush1.msra.mxu0 %v66
    %918 = vmatprep.subr.mxu0 %v65
    %919 = vmatpush1.msra.mxu0 %v64
    %920 = vmatprep.subr.mxu0 %v63
    %921 = vmatpush1.msra.mxu0 %v62
    %922 = vmatprep.subr.mxu0 %v61
    %923 = vmatpush1.msra.mxu0 %v60
    %924 = vmatprep.subr.mxu0 %v59
    %925 = vmatpush1.msra.mxu0 %v58
    %926 = vmatprep.subr.mxu0 0.0
    %927 = vmatpush2.msra.mxu0 0.0
    %928 = vmatprep.subr.mxu0 0.0
    %929 = vmatpush2.msra.mxu0 0.0
    %930 = vmatprep.subr.mxu0 0.0
    %931 = vmatpush2.msra.mxu0 0.0
    %932 = vmatprep.subr.mxu0 0.0
    %933 = vmatpush2.msra.mxu0 0.0
    %934 = vmatprep.subr.mxu0 0.0
    %935 = vmatpush2.msra.mxu0 0.0
    %936 = vmatprep.subr.mxu0 0.0
    %937 = vmatpush2.msra.mxu0 0.0
    %938 = vmatprep.subr.mxu0 0.0
    %939 = vmatpush2.msra.mxu0 0.0
    %940 = vmatprep.subr.mxu0 0.0
    %941 = vmatpush2.msra.mxu0 0.0
    %942 = vmatprep.subr.mxu0 0.0
    %943 = vmatpush2.msra.mxu0 0.0
    %944 = vmatprep.subr.mxu0 0.0
    %945 = vmatpush2.msra.mxu0 0.0
    %946 = vmatprep.subr.mxu0 0.0
    %947 = vmatpush2.msra.mxu0 0.0
    %948 = vmatprep.subr.mxu0 0.0
    %949 = vmatpush2.msra.mxu0 0.0
    %950 = vmatprep.subr.mxu0 0.0
    %951 = vmatpush2.msra.mxu0 0.0
    %952 = vmatprep.subr.mxu0 0.0
    %953 = vmatpush2.msra.mxu0 0.0
    %954 = vmatprep.subr.mxu0 0.0
    %955 = vmatpush2.msra.mxu0 0.0
    %956 = vmatprep.subr.mxu0 0.0
    %957 = vmatpush2.msra.mxu0 0.0
    %958 = vmatprep.mubr.f32.mxu0 0.0
    %959 = vmatmul.mubr.f32.gmra.mxu0 %v892
    %v960 = vpop.f32.mrf.mxu0
    %v961 = vadd.f32 0.0, %v960
    %v962 = vpop.f32.mrf.mxu0
    %v963 = vadd.f32 0.0, %v962
    %964 = vdwg.mxu0
    %v965 = vadd.f32 %v887, %v961
    %v966 = vadd.f32 %v888, %v963
    %v967 = vxor.u32 %v965, 2147483648
    %v968 = vmul.f32 %v967, 1.442695
    %v969 = vpow.pop %v968
    %v970 = vadd.f32 %v969, 1.0
    %v971 = vrcp.pop %v970
    %v972 = vmul.f32 1.0, %v971
    %v973 = vtanh.pop %v966
    %v974 = vxor.u32 %v966, 2147483648
    %v975 = vmul.f32 %v974, 1.442695
    %v976 = vpow.pop %v975
    %v977 = vadd.f32 %v976, 1.0
    %v978 = vrcp.pop %v977
    %v979 = vmul.f32 1.0, %v978
    %v980 = vmul.f32 %v972, %v880
    %v981 = vmul.f32 %v972, %v973
    %983 = vrot.lane.b32.xlu0 %v981, 64
    %v984 = vpop.permute.xlu0 %983
    %v986 = vadd.f32 %v980, %v984
    %v987 = vtanh.pop %v986
    %v988 = vmul.f32 %v979, %v987
    %v989 = vld [vmem:[%s717] sm:$0xff]
    %v990 = vld [vmem:[%s717 + $0x8] sm:$0xff]
    %v991 = vld [vmem:[%s732] sm:$0xff]
    %v992 = vld [vmem:[%s732 + $0x8] sm:$0xff]
    %v993 = vsel %vm780, %v989, %v991
    %v994 = vsel %vm781, %v990, %v992
    %996 = vrot.lane.b32.xlu0 %v988, 64
    %v997 = vpop.permute.xlu0 %996
    %v998 = vsel %vm784, %v997, 0
    %1000 = vmatprep.subr.mxu0 0.0
    %1001 = vmatpush1.msra.mxu0 0.0
    %1002 = vmatprep.subr.mxu0 0.0
    %1003 = vmatpush1.msra.mxu0 0.0
    %1004 = vmatprep.subr.mxu0 0.0
    %1005 = vmatpush1.msra.mxu0 0.0
    %1006 = vmatprep.subr.mxu0 0.0
    %1007 = vmatpush1.msra.mxu0 0.0
    %1008 = vmatprep.subr.mxu0 0.0
    %1009 = vmatpush1.msra.mxu0 0.0
    %1010 = vmatprep.subr.mxu0 0.0
    %1011 = vmatpush1.msra.mxu0 0.0
    %1012 = vmatprep.subr.mxu0 0.0
    %1013 = vmatpush1.msra.mxu0 0.0
    %1014 = vmatprep.subr.mxu0 0.0
    %1015 = vmatpush1.msra.mxu0 0.0
    %1016 = vmatprep.subr.mxu0 %v73
    %1017 = vmatpush1.msra.mxu0 %v72
    %1018 = vmatprep.subr.mxu0 %v71
    %1019 = vmatpush1.msra.mxu0 %v70
    %1020 = vmatprep.subr.mxu0 %v69
    %1021 = vmatpush1.msra.mxu0 %v68
    %1022 = vmatprep.subr.mxu0 %v67
    %1023 = vmatpush1.msra.mxu0 %v66
    %1024 = vmatprep.subr.mxu0 %v65
    %1025 = vmatpush1.msra.mxu0 %v64
    %1026 = vmatprep.subr.mxu0 %v63
    %1027 = vmatpush1.msra.mxu0 %v62
    %1028 = vmatprep.subr.mxu0 %v61
    %1029 = vmatpush1.msra.mxu0 %v60
    %1030 = vmatprep.subr.mxu0 %v59
    %1031 = vmatpush1.msra.mxu0 %v58
    %1032 = vmatprep.subr.mxu0 0.0
    %1033 = vmatpush2.msra.mxu0 0.0
    %1034 = vmatprep.subr.mxu0 0.0
    %1035 = vmatpush2.msra.mxu0 0.0
    %1036 = vmatprep.subr.mxu0 0.0
    %1037 = vmatpush2.msra.mxu0 0.0
    %1038 = vmatprep.subr.mxu0 0.0
    %1039 = vmatpush2.msra.mxu0 0.0
    %1040 = vmatprep.subr.mxu0 0.0
    %1041 = vmatpush2.msra.mxu0 0.0
    %1042 = vmatprep.subr.mxu0 0.0
    %1043 = vmatpush2.msra.mxu0 0.0
    %1044 = vmatprep.subr.mxu0 0.0
    %1045 = vmatpush2.msra.mxu0 0.0
    %1046 = vmatprep.subr.mxu0 0.0
    %1047 = vmatpush2.msra.mxu0 0.0
    %1048 = vmatprep.subr.mxu0 0.0
    %1049 = vmatpush2.msra.mxu0 0.0
    %1050 = vmatprep.subr.mxu0 0.0
    %1051 = vmatpush2.msra.mxu0 0.0
    %1052 = vmatprep.subr.mxu0 0.0
    %1053 = vmatpush2.msra.mxu0 0.0
    %1054 = vmatprep.subr.mxu0 0.0
    %1055 = vmatpush2.msra.mxu0 0.0
    %1056 = vmatprep.subr.mxu0 0.0
    %1057 = vmatpush2.msra.mxu0 0.0
    %1058 = vmatprep.subr.mxu0 0.0
    %1059 = vmatpush2.msra.mxu0 0.0
    %1060 = vmatprep.subr.mxu0 0.0
    %1061 = vmatpush2.msra.mxu0 0.0
    %1062 = vmatprep.subr.mxu0 0.0
    %1063 = vmatpush2.msra.mxu0 0.0
    %1064 = vmatprep.mubr.f32.mxu0 0.0
    %1065 = vmatmul.mubr.f32.gmra.mxu0 %v998
    %v1066 = vpop.f32.mrf.mxu0
    %v1067 = vadd.f32 0.0, %v1066
    %v1068 = vpop.f32.mrf.mxu0
    %v1069 = vadd.f32 0.0, %v1068
    %1070 = vdwg.mxu0
    %v1071 = vadd.f32 %v993, %v1067
    %v1072 = vadd.f32 %v994, %v1069
    %v1073 = vxor.u32 %v1071, 2147483648
    %v1074 = vmul.f32 %v1073, 1.442695
    %v1075 = vpow.pop %v1074
    %v1076 = vadd.f32 %v1075, 1.0
    %v1077 = vrcp.pop %v1076
    %v1078 = vmul.f32 1.0, %v1077
    %v1079 = vtanh.pop %v1072
    %v1080 = vxor.u32 %v1072, 2147483648
    %v1081 = vmul.f32 %v1080, 1.442695
    %v1082 = vpow.pop %v1081
    %v1083 = vadd.f32 %v1082, 1.0
    %v1084 = vrcp.pop %v1083
    %v1085 = vmul.f32 1.0, %v1084
    %v1086 = vmul.f32 %v1078, %v986
    %v1087 = vmul.f32 %v1078, %v1079
    %1089 = vrot.lane.b32.xlu0 %v1087, 64
    %v1090 = vpop.permute.xlu0 %1089
    %v1092 = vadd.f32 %v1086, %v1090
    %v1093 = vtanh.pop %v1092
    %v1094 = vmul.f32 %v1085, %v1093
    %v1095 = vld [vmem:[%s722] sm:$0xff]
    %v1096 = vld [vmem:[%s722 + $0x8] sm:$0xff]
    %v1097 = vld [vmem:[%s727] sm:$0xff]
    %v1098 = vld [vmem:[%s727 + $0x8] sm:$0xff]
    %v1099 = vsel %vm780, %v1095, %v1097
    %v1100 = vsel %vm781, %v1096, %v1098
    %1102 = vrot.lane.b32.xlu0 %v1094, 64
    %v1103 = vpop.permute.xlu0 %1102
    %v1104 = vsel %vm784, %v1103, 0
    %1106 = vmatprep.subr.mxu0 0.0
    %1107 = vmatpush1.msra.mxu0 0.0
    %1108 = vmatprep.subr.mxu0 0.0
    %1109 = vmatpush1.msra.mxu0 0.0
    %1110 = vmatprep.subr.mxu0 0.0
    %1111 = vmatpush1.msra.mxu0 0.0
    %1112 = vmatprep.subr.mxu0 0.0
    %1113 = vmatpush1.msra.mxu0 0.0
    %1114 = vmatprep.subr.mxu0 0.0
    %1115 = vmatpush1.msra.mxu0 0.0
    %1116 = vmatprep.subr.mxu0 0.0
    %1117 = vmatpush1.msra.mxu0 0.0
    %1118 = vmatprep.subr.mxu0 0.0
    %1119 = vmatpush1.msra.mxu0 0.0
    %1120 = vmatprep.subr.mxu0 0.0
    %1121 = vmatpush1.msra.mxu0 0.0
    %1122 = vmatprep.subr.mxu0 %v73
    %1123 = vmatpush1.msra.mxu0 %v72
    %1124 = vmatprep.subr.mxu0 %v71
    %1125 = vmatpush1.msra.mxu0 %v70
    %1126 = vmatprep.subr.mxu0 %v69
    %1127 = vmatpush1.msra.mxu0 %v68
    %1128 = vmatprep.subr.mxu0 %v67
    %1129 = vmatpush1.msra.mxu0 %v66
    %1130 = vmatprep.subr.mxu0 %v65
    %1131 = vmatpush1.msra.mxu0 %v64
    %1132 = vmatprep.subr.mxu0 %v63
    %1133 = vmatpush1.msra.mxu0 %v62
    %1134 = vmatprep.subr.mxu0 %v61
    %1135 = vmatpush1.msra.mxu0 %v60
    %1136 = vmatprep.subr.mxu0 %v59
    %1137 = vmatpush1.msra.mxu0 %v58
    %1138 = vmatprep.subr.mxu0 0.0
    %1139 = vmatpush2.msra.mxu0 0.0
    %1140 = vmatprep.subr.mxu0 0.0
    %1141 = vmatpush2.msra.mxu0 0.0
    %1142 = vmatprep.subr.mxu0 0.0
    %1143 = vmatpush2.msra.mxu0 0.0
    %1144 = vmatprep.subr.mxu0 0.0
    %1145 = vmatpush2.msra.mxu0 0.0
    %1146 = vmatprep.subr.mxu0 0.0
    %1147 = vmatpush2.msra.mxu0 0.0
    %1148 = vmatprep.subr.mxu0 0.0
    %1149 = vmatpush2.msra.mxu0 0.0
    %1150 = vmatprep.subr.mxu0 0.0
    %1151 = vmatpush2.msra.mxu0 0.0
    %1152 = vmatprep.subr.mxu0 0.0
    %1153 = vmatpush2.msra.mxu0 0.0
    %1154 = vmatprep.subr.mxu0 0.0
    %1155 = vmatpush2.msra.mxu0 0.0
    %1156 = vmatprep.subr.mxu0 0.0
    %1157 = vmatpush2.msra.mxu0 0.0
    %1158 = vmatprep.subr.mxu0 0.0
    %1159 = vmatpush2.msra.mxu0 0.0
    %1160 = vmatprep.subr.mxu0 0.0
    %1161 = vmatpush2.msra.mxu0 0.0
    %1162 = vmatprep.subr.mxu0 0.0
    %1163 = vmatpush2.msra.mxu0 0.0
    %1164 = vmatprep.subr.mxu0 0.0
    %1165 = vmatpush2.msra.mxu0 0.0
    %1166 = vmatprep.subr.mxu0 0.0
    %1167 = vmatpush2.msra.mxu0 0.0
    %1168 = vmatprep.subr.mxu0 0.0
    %1169 = vmatpush2.msra.mxu0 0.0
    %1170 = vmatprep.mubr.f32.mxu0 0.0
    %1171 = vmatmul.mubr.f32.gmra.mxu0 %v1104
    %v1172 = vpop.f32.mrf.mxu0
    %v1173 = vadd.f32 0.0, %v1172
    %v1174 = vpop.f32.mrf.mxu0
    %v1175 = vadd.f32 0.0, %v1174
    %1176 = vdwg.mxu0
    %v1177 = vadd.f32 %v1099, %v1173
    %v1178 = vadd.f32 %v1100, %v1175
    %v1179 = vxor.u32 %v1177, 2147483648
    %v1180 = vmul.f32 %v1179, 1.442695
    %v1181 = vpow.pop %v1180
    %v1182 = vadd.f32 %v1181, 1.0
    %v1183 = vrcp.pop %v1182
    %v1184 = vmul.f32 1.0, %v1183
    %v1185 = vtanh.pop %v1178
    %v1186 = vxor.u32 %v1178, 2147483648
    %v1187 = vmul.f32 %v1186, 1.442695
    %v1188 = vpow.pop %v1187
    %v1189 = vadd.f32 %v1188, 1.0
    %v1190 = vrcp.pop %v1189
    %v1191 = vmul.f32 1.0, %v1190
    %v1192 = vmul.f32 %v1184, %v1092
    %v1193 = vmul.f32 %v1184, %v1185
    %1195 = vrot.lane.b32.xlu0 %v1193, 64
    %v1196 = vpop.permute.xlu0 %1195
    %v1198 = vadd.f32 %v1192, %v1196
    %v1199 = vtanh.pop %v1198
    %v1200 = vmul.f32 %v1191, %v1199
    %v1201 = vsel %vm780, %v1097, %v1095
    %v1202 = vsel %vm781, %v1098, %v1096
    %1204 = vrot.lane.b32.xlu0 %v1200, 64
    %v1205 = vpop.permute.xlu0 %1204
    %v1206 = vsel %vm784, %v1205, 0
    %1208 = vmatprep.subr.mxu0 0.0
    %1209 = vmatpush1.msra.mxu0 0.0
    %1210 = vmatprep.subr.mxu0 0.0
    %1211 = vmatpush1.msra.mxu0 0.0
    %1212 = vmatprep.subr.mxu0 0.0
    %1213 = vmatpush1.msra.mxu0 0.0
    %1214 = vmatprep.subr.mxu0 0.0
    %1215 = vmatpush1.msra.mxu0 0.0
    %1216 = vmatprep.subr.mxu0 0.0
    %1217 = vmatpush1.msra.mxu0 0.0
    %1218 = vmatprep.subr.mxu0 0.0
    %1219 = vmatpush1.msra.mxu0 0.0
    %1220 = vmatprep.subr.mxu0 0.0
    %1221 = vmatpush1.msra.mxu0 0.0
    %1222 = vmatprep.subr.mxu0 0.0
    %1223 = vmatpush1.msra.mxu0 0.0
    %1224 = vmatprep.subr.mxu0 %v73
    %1225 = vmatpush1.msra.mxu0 %v72
    %1226 = vmatprep.subr.mxu0 %v71
    %1227 = vmatpush1.msra.mxu0 %v70
    %1228 = vmatprep.subr.mxu0 %v69
    %1229 = vmatpush1.msra.mxu0 %v68
    %1230 = vmatprep.subr.mxu0 %v67
    %1231 = vmatpush1.msra.mxu0 %v66
    %1232 = vmatprep.subr.mxu0 %v65
    %1233 = vmatpush1.msra.mxu0 %v64
    %1234 = vmatprep.subr.mxu0 %v63
    %1235 = vmatpush1.msra.mxu0 %v62
    %1236 = vmatprep.subr.mxu0 %v61
    %1237 = vmatpush1.msra.mxu0 %v60
    %1238 = vmatprep.subr.mxu0 %v59
    %1239 = vmatpush1.msra.mxu0 %v58
    %1240 = vmatprep.subr.mxu0 0.0
    %1241 = vmatpush2.msra.mxu0 0.0
    %1242 = vmatprep.subr.mxu0 0.0
    %1243 = vmatpush2.msra.mxu0 0.0
    %1244 = vmatprep.subr.mxu0 0.0
    %1245 = vmatpush2.msra.mxu0 0.0
    %1246 = vmatprep.subr.mxu0 0.0
    %1247 = vmatpush2.msra.mxu0 0.0
    %1248 = vmatprep.subr.mxu0 0.0
    %1249 = vmatpush2.msra.mxu0 0.0
    %1250 = vmatprep.subr.mxu0 0.0
    %1251 = vmatpush2.msra.mxu0 0.0
    %1252 = vmatprep.subr.mxu0 0.0
    %1253 = vmatpush2.msra.mxu0 0.0
    %1254 = vmatprep.subr.mxu0 0.0
    %1255 = vmatpush2.msra.mxu0 0.0
    %1256 = vmatprep.subr.mxu0 0.0
    %1257 = vmatpush2.msra.mxu0 0.0
    %1258 = vmatprep.subr.mxu0 0.0
    %1259 = vmatpush2.msra.mxu0 0.0
    %1260 = vmatprep.subr.mxu0 0.0
    %1261 = vmatpush2.msra.mxu0 0.0
    %1262 = vmatprep.subr.mxu0 0.0
    %1263 = vmatpush2.msra.mxu0 0.0
    %1264 = vmatprep.subr.mxu0 0.0
    %1265 = vmatpush2.msra.mxu0 0.0
    %1266 = vmatprep.subr.mxu0 0.0
    %1267 = vmatpush2.msra.mxu0 0.0
    %1268 = vmatprep.subr.mxu0 0.0
    %1269 = vmatpush2.msra.mxu0 0.0
    %1270 = vmatprep.subr.mxu0 0.0
    %1271 = vmatpush2.msra.mxu0 0.0
    %1272 = vmatprep.mubr.f32.mxu0 0.0
    %1273 = vmatmul.mubr.f32.gmra.mxu0 %v1206
    %v1274 = vpop.f32.mrf.mxu0
    %v1275 = vadd.f32 0.0, %v1274
    %v1276 = vpop.f32.mrf.mxu0
    %v1277 = vadd.f32 0.0, %v1276
    %1278 = vdwg.mxu0
    %v1279 = vadd.f32 %v1201, %v1275
    %v1280 = vadd.f32 %v1202, %v1277
    %v1281 = vxor.u32 %v1279, 2147483648
    %v1282 = vmul.f32 %v1281, 1.442695
    %v1283 = vpow.pop %v1282
    %v1284 = vadd.f32 %v1283, 1.0
    %v1285 = vrcp.pop %v1284
    %v1286 = vmul.f32 1.0, %v1285
    %v1287 = vtanh.pop %v1280
    %v1288 = vxor.u32 %v1280, 2147483648
    %v1289 = vmul.f32 %v1288, 1.442695
    %v1290 = vpow.pop %v1289
    %v1291 = vadd.f32 %v1290, 1.0
    %v1292 = vrcp.pop %v1291
    %v1293 = vmul.f32 1.0, %v1292
    %v1294 = vmul.f32 %v1286, %v1198
    %v1295 = vmul.f32 %v1286, %v1287
    %1297 = vrot.lane.b32.xlu0 %v1295, 64
    %v1298 = vpop.permute.xlu0 %1297
    %v1300 = vadd.f32 %v1294, %v1298
    %v1301 = vtanh.pop %v1300
    %v1302 = vmul.f32 %v1293, %v1301
    %v1303 = vsel %vm780, %v991, %v989
    %v1304 = vsel %vm781, %v992, %v990
    %1306 = vrot.lane.b32.xlu0 %v1302, 64
    %v1307 = vpop.permute.xlu0 %1306
    %v1308 = vsel %vm784, %v1307, 0
    %1310 = vmatprep.subr.mxu0 0.0
    %1311 = vmatpush1.msra.mxu0 0.0
    %1312 = vmatprep.subr.mxu0 0.0
    %1313 = vmatpush1.msra.mxu0 0.0
    %1314 = vmatprep.subr.mxu0 0.0
    %1315 = vmatpush1.msra.mxu0 0.0
    %1316 = vmatprep.subr.mxu0 0.0
    %1317 = vmatpush1.msra.mxu0 0.0
    %1318 = vmatprep.subr.mxu0 0.0
    %1319 = vmatpush1.msra.mxu0 0.0
    %1320 = vmatprep.subr.mxu0 0.0
    %1321 = vmatpush1.msra.mxu0 0.0
    %1322 = vmatprep.subr.mxu0 0.0
    %1323 = vmatpush1.msra.mxu0 0.0
    %1324 = vmatprep.subr.mxu0 0.0
    %1325 = vmatpush1.msra.mxu0 0.0
    %1326 = vmatprep.subr.mxu0 %v73
    %1327 = vmatpush1.msra.mxu0 %v72
    %1328 = vmatprep.subr.mxu0 %v71
    %1329 = vmatpush1.msra.mxu0 %v70
    %1330 = vmatprep.subr.mxu0 %v69
    %1331 = vmatpush1.msra.mxu0 %v68
    %1332 = vmatprep.subr.mxu0 %v67
    %1333 = vmatpush1.msra.mxu0 %v66
    %1334 = vmatprep.subr.mxu0 %v65
    %1335 = vmatpush1.msra.mxu0 %v64
    %1336 = vmatprep.subr.mxu0 %v63
    %1337 = vmatpush1.msra.mxu0 %v62
    %1338 = vmatprep.subr.mxu0 %v61
    %1339 = vmatpush1.msra.mxu0 %v60
    %1340 = vmatprep.subr.mxu0 %v59
    %1341 = vmatpush1.msra.mxu0 %v58
    %1342 = vmatprep.subr.mxu0 0.0
    %1343 = vmatpush2.msra.mxu0 0.0
    %1344 = vmatprep.subr.mxu0 0.0
    %1345 = vmatpush2.msra.mxu0 0.0
    %1346 = vmatprep.subr.mxu0 0.0
    %1347 = vmatpush2.msra.mxu0 0.0
    %1348 = vmatprep.subr.mxu0 0.0
    %1349 = vmatpush2.msra.mxu0 0.0
    %1350 = vmatprep.subr.mxu0 0.0
    %1351 = vmatpush2.msra.mxu0 0.0
    %1352 = vmatprep.subr.mxu0 0.0
    %1353 = vmatpush2.msra.mxu0 0.0
    %1354 = vmatprep.subr.mxu0 0.0
    %1355 = vmatpush2.msra.mxu0 0.0
    %1356 = vmatprep.subr.mxu0 0.0
    %1357 = vmatpush2.msra.mxu0 0.0
    %1358 = vmatprep.subr.mxu0 0.0
    %1359 = vmatpush2.msra.mxu0 0.0
    %1360 = vmatprep.subr.mxu0 0.0
    %1361 = vmatpush2.msra.mxu0 0.0
    %1362 = vmatprep.subr.mxu0 0.0
    %1363 = vmatpush2.msra.mxu0 0.0
    %1364 = vmatprep.subr.mxu0 0.0
    %1365 = vmatpush2.msra.mxu0 0.0
    %1366 = vmatprep.subr.mxu0 0.0
    %1367 = vmatpush2.msra.mxu0 0.0
    %1368 = vmatprep.subr.mxu0 0.0
    %1369 = vmatpush2.msra.mxu0 0.0
    %1370 = vmatprep.subr.mxu0 0.0
    %1371 = vmatpush2.msra.mxu0 0.0
    %1372 = vmatprep.subr.mxu0 0.0
    %1373 = vmatpush2.msra.mxu0 0.0
    %1374 = vmatprep.mubr.f32.mxu0 0.0
    %1375 = vmatmul.mubr.f32.gmra.mxu0 %v1308
    %v1376 = vpop.f32.mrf.mxu0
    %v1377 = vadd.f32 0.0, %v1376
    %v1378 = vpop.f32.mrf.mxu0
    %v1379 = vadd.f32 0.0, %v1378
    %1380 = vdwg.mxu0
    %v1381 = vadd.f32 %v1303, %v1377
    %v1382 = vadd.f32 %v1304, %v1379
    %v1383 = vxor.u32 %v1381, 2147483648
    %v1384 = vmul.f32 %v1383, 1.442695
    %v1385 = vpow.pop %v1384
    %v1386 = vadd.f32 %v1385, 1.0
    %v1387 = vrcp.pop %v1386
    %v1388 = vmul.f32 1.0, %v1387
    %v1389 = vtanh.pop %v1382
    %v1390 = vxor.u32 %v1382, 2147483648
    %v1391 = vmul.f32 %v1390, 1.442695
    %v1392 = vpow.pop %v1391
    %v1393 = vadd.f32 %v1392, 1.0
    %v1394 = vrcp.pop %v1393
    %v1395 = vmul.f32 1.0, %v1394
    %v1396 = vmul.f32 %v1388, %v1300
    %v1397 = vmul.f32 %v1388, %v1389
    %1399 = vrot.lane.b32.xlu0 %v1397, 64
    %v1400 = vpop.permute.xlu0 %1399
    %v1402 = vadd.f32 %v1396, %v1400
    %v1403 = vtanh.pop %v1402
    %v1404 = vmul.f32 %v1395, %v1403
    %v1405 = vsel %vm780, %v885, %v883
    %v1406 = vsel %vm781, %v886, %v884
    %1408 = vrot.lane.b32.xlu0 %v1404, 64
    %v1409 = vpop.permute.xlu0 %1408
    %v1410 = vsel %vm784, %v1409, 0
    %1412 = vmatprep.subr.mxu0 0.0
    %1413 = vmatpush1.msra.mxu0 0.0
    %1414 = vmatprep.subr.mxu0 0.0
    %1415 = vmatpush1.msra.mxu0 0.0
    %1416 = vmatprep.subr.mxu0 0.0
    %1417 = vmatpush1.msra.mxu0 0.0
    %1418 = vmatprep.subr.mxu0 0.0
    %1419 = vmatpush1.msra.mxu0 0.0
    %1420 = vmatprep.subr.mxu0 0.0
    %1421 = vmatpush1.msra.mxu0 0.0
    %1422 = vmatprep.subr.mxu0 0.0
    %1423 = vmatpush1.msra.mxu0 0.0
    %1424 = vmatprep.subr.mxu0 0.0
    %1425 = vmatpush1.msra.mxu0 0.0
    %1426 = vmatprep.subr.mxu0 0.0
    %1427 = vmatpush1.msra.mxu0 0.0
    %1428 = vmatprep.subr.mxu0 %v73
    %1429 = vmatpush1.msra.mxu0 %v72
    %1430 = vmatprep.subr.mxu0 %v71
    %1431 = vmatpush1.msra.mxu0 %v70
    %1432 = vmatprep.subr.mxu0 %v69
    %1433 = vmatpush1.msra.mxu0 %v68
    %1434 = vmatprep.subr.mxu0 %v67
    %1435 = vmatpush1.msra.mxu0 %v66
    %1436 = vmatprep.subr.mxu0 %v65
    %1437 = vmatpush1.msra.mxu0 %v64
    %1438 = vmatprep.subr.mxu0 %v63
    %1439 = vmatpush1.msra.mxu0 %v62
    %1440 = vmatprep.subr.mxu0 %v61
    %1441 = vmatpush1.msra.mxu0 %v60
    %1442 = vmatprep.subr.mxu0 %v59
    %1443 = vmatpush1.msra.mxu0 %v58
    %1444 = vmatprep.subr.mxu0 0.0
    %1445 = vmatpush2.msra.mxu0 0.0
    %1446 = vmatprep.subr.mxu0 0.0
    %1447 = vmatpush2.msra.mxu0 0.0
    %1448 = vmatprep.subr.mxu0 0.0
    %1449 = vmatpush2.msra.mxu0 0.0
    %1450 = vmatprep.subr.mxu0 0.0
    %1451 = vmatpush2.msra.mxu0 0.0
    %1452 = vmatprep.subr.mxu0 0.0
    %1453 = vmatpush2.msra.mxu0 0.0
    %1454 = vmatprep.subr.mxu0 0.0
    %1455 = vmatpush2.msra.mxu0 0.0
    %1456 = vmatprep.subr.mxu0 0.0
    %1457 = vmatpush2.msra.mxu0 0.0
    %1458 = vmatprep.subr.mxu0 0.0
    %1459 = vmatpush2.msra.mxu0 0.0
    %1460 = vmatprep.subr.mxu0 0.0
    %1461 = vmatpush2.msra.mxu0 0.0
    %1462 = vmatprep.subr.mxu0 0.0
    %1463 = vmatpush2.msra.mxu0 0.0
    %1464 = vmatprep.subr.mxu0 0.0
    %1465 = vmatpush2.msra.mxu0 0.0
    %1466 = vmatprep.subr.mxu0 0.0
    %1467 = vmatpush2.msra.mxu0 0.0
    %1468 = vmatprep.subr.mxu0 0.0
    %1469 = vmatpush2.msra.mxu0 0.0
    %1470 = vmatprep.subr.mxu0 0.0
    %1471 = vmatpush2.msra.mxu0 0.0
    %1472 = vmatprep.subr.mxu0 0.0
    %1473 = vmatpush2.msra.mxu0 0.0
    %1474 = vmatprep.subr.mxu0 0.0
    %1475 = vmatpush2.msra.mxu0 0.0
    %1476 = vmatprep.mubr.f32.mxu0 0.0
    %1477 = vmatmul.mubr.f32.gmra.mxu0 %v1410
    %v1478 = vpop.f32.mrf.mxu0
    %v1479 = vadd.f32 0.0, %v1478
    %v1480 = vpop.f32.mrf.mxu0
    %v1481 = vadd.f32 0.0, %v1480
    %1482 = vdwg.mxu0
    %v1483 = vadd.f32 %v1405, %v1479
    %v1484 = vadd.f32 %v1406, %v1481
    %v1485 = vxor.u32 %v1483, 2147483648
    %v1486 = vmul.f32 %v1485, 1.442695
    %v1487 = vpow.pop %v1486
    %v1488 = vadd.f32 %v1487, 1.0
    %v1489 = vrcp.pop %v1488
    %v1490 = vmul.f32 1.0, %v1489
    %v1491 = vtanh.pop %v1484
    %v1492 = vxor.u32 %v1484, 2147483648
    %v1493 = vmul.f32 %v1492, 1.442695
    %v1494 = vpow.pop %v1493
    %v1495 = vadd.f32 %v1494, 1.0
    %v1496 = vrcp.pop %v1495
    %v1497 = vmul.f32 1.0, %v1496
    %v1498 = vmul.f32 %v1490, %v1402
    %v1499 = vmul.f32 %v1490, %v1491
    %1501 = vrot.lane.b32.xlu0 %v1499, 64
    %v1502 = vpop.permute.xlu0 %1501
    %v1504 = vadd.f32 %v1498, %v1502
    %v1505 = vtanh.pop %v1504
    %v1506 = vmul.f32 %v1497, %v1505
    %v1507 = vsel %vm780, %v776, %v774
    %v1508 = vsel %vm781, %v777, %v775
    %1510 = vrot.lane.b32.xlu0 %v1506, 64
    %v1511 = vpop.permute.xlu0 %1510
    %v1512 = vsel %vm784, %v1511, 0
    %1514 = vmatprep.subr.mxu0 0.0
    %1515 = vmatpush1.msra.mxu0 0.0
    %1516 = vmatprep.subr.mxu0 0.0
    %1517 = vmatpush1.msra.mxu0 0.0
    %1518 = vmatprep.subr.mxu0 0.0
    %1519 = vmatpush1.msra.mxu0 0.0
    %1520 = vmatprep.subr.mxu0 0.0
    %1521 = vmatpush1.msra.mxu0 0.0
    %1522 = vmatprep.subr.mxu0 0.0
    %1523 = vmatpush1.msra.mxu0 0.0
    %1524 = vmatprep.subr.mxu0 0.0
    %1525 = vmatpush1.msra.mxu0 0.0
    %1526 = vmatprep.subr.mxu0 0.0
    %1527 = vmatpush1.msra.mxu0 0.0
    %1528 = vmatprep.subr.mxu0 0.0
    %1529 = vmatpush1.msra.mxu0 0.0
    %1530 = vmatprep.subr.mxu0 %v73
    %1531 = vmatpush1.msra.mxu0 %v72
    %1532 = vmatprep.subr.mxu0 %v71
    %1533 = vmatpush1.msra.mxu0 %v70
    %1534 = vmatprep.subr.mxu0 %v69
    %1535 = vmatpush1.msra.mxu0 %v68
    %1536 = vmatprep.subr.mxu0 %v67
    %1537 = vmatpush1.msra.mxu0 %v66
    %1538 = vmatprep.subr.mxu0 %v65
    %1539 = vmatpush1.msra.mxu0 %v64
    %1540 = vmatprep.subr.mxu0 %v63
    %1541 = vmatpush1.msra.mxu0 %v62
    %1542 = vmatprep.subr.mxu0 %v61
    %1543 = vmatpush1.msra.mxu0 %v60
    %1544 = vmatprep.subr.mxu0 %v59
    %1545 = vmatpush1.msra.mxu0 %v58
    %1546 = vmatprep.subr.mxu0 0.0
    %1547 = vmatpush2.msra.mxu0 0.0
    %1548 = vmatprep.subr.mxu0 0.0
    %1549 = vmatpush2.msra.mxu0 0.0
    %1550 = vmatprep.subr.mxu0 0.0
    %1551 = vmatpush2.msra.mxu0 0.0
    %1552 = vmatprep.subr.mxu0 0.0
    %1553 = vmatpush2.msra.mxu0 0.0
    %1554 = vmatprep.subr.mxu0 0.0
    %1555 = vmatpush2.msra.mxu0 0.0
    %1556 = vmatprep.subr.mxu0 0.0
    %1557 = vmatpush2.msra.mxu0 0.0
    %1558 = vmatprep.subr.mxu0 0.0
    %1559 = vmatpush2.msra.mxu0 0.0
    %1560 = vmatprep.subr.mxu0 0.0
    %1561 = vmatpush2.msra.mxu0 0.0
    %1562 = vmatprep.subr.mxu0 0.0
    %1563 = vmatpush2.msra.mxu0 0.0
    %1564 = vmatprep.subr.mxu0 0.0
    %1565 = vmatpush2.msra.mxu0 0.0
    %1566 = vmatprep.subr.mxu0 0.0
    %1567 = vmatpush2.msra.mxu0 0.0
    %1568 = vmatprep.subr.mxu0 0.0
    %1569 = vmatpush2.msra.mxu0 0.0
    %1570 = vmatprep.subr.mxu0 0.0
    %1571 = vmatpush2.msra.mxu0 0.0
    %1572 = vmatprep.subr.mxu0 0.0
    %1573 = vmatpush2.msra.mxu0 0.0
    %1574 = vmatprep.subr.mxu0 0.0
    %1575 = vmatpush2.msra.mxu0 0.0
    %1576 = vmatprep.subr.mxu0 0.0
    %1577 = vmatpush2.msra.mxu0 0.0
    %1578 = vmatprep.mubr.f32.mxu0 0.0
    %1579 = vmatmul.mubr.f32.gmra.mxu0 %v1512
    %v1580 = vpop.f32.mrf.mxu0
    %v1581 = vadd.f32 0.0, %v1580
    %v1582 = vpop.f32.mrf.mxu0
    %v1583 = vadd.f32 0.0, %v1582
    %1584 = vdwg.mxu0
    %v1585 = vadd.f32 %v1507, %v1581
    %v1586 = vadd.f32 %v1508, %v1583
    %v1587 = vxor.u32 %v1585, 2147483648
    %v1588 = vmul.f32 %v1587, 1.442695
    %v1589 = vpow.pop %v1588
    %v1590 = vadd.f32 %v1589, 1.0
    %v1591 = vrcp.pop %v1590
    %v1592 = vmul.f32 1.0, %v1591
    %v1593 = vtanh.pop %v1586
    %v1594 = vxor.u32 %v1586, 2147483648
    %v1595 = vmul.f32 %v1594, 1.442695
    %v1596 = vpow.pop %v1595
    %v1597 = vadd.f32 %v1596, 1.0
    %v1598 = vrcp.pop %v1597
    %v1599 = vmul.f32 1.0, %v1598
    %v1600 = vmul.f32 %v1592, %v1504
    %v1601 = vmul.f32 %v1592, %v1593
    %1603 = vrot.lane.b32.xlu0 %v1601, 64
    %v1604 = vpop.permute.xlu0 %1603
    %v1606 = vadd.f32 %v1600, %v1604
    %v1607 = vtanh.pop %v1606
    %v1608 = vmul.f32 %v1599, %v1607
    %1610 = vrot.lane.b32.xlu0 %v1608, 96
    %v1611 = vpop.permute.xlu0 %1610
    %v1613 = vadd.f32 %v1608, %v1611
    %v1614 = vld [vmem:[%s4] sm:$0xff]
    %v1615 = vld [vmem:[%s4 + $0x8] sm:$0xff]
    %v1616 = vld [vmem:[%s4 + $0x10] sm:$0xff]
    %v1617 = vld [vmem:[%s4 + $0x18] sm:$0xff]
    %v1618 = vld [vmem:[%s5] sm:$0x1]
    %v1620 = vlaneseq
    %v1621 = vshrl.u32 %v1620, 7
    %v1622 = vsub.s32 0, %v1621
    %v1623 = vrot.slane %v1618, %v1622
    %1626 = vrot.lane.b32.xlu0 %v1613, 64
    %v1627 = vpop.permute.xlu0 %1626
    %vm1628 = vcmask 261120
    %v1629 = vsel %vm1628, %v1627, 0
    %1631 = vmatprep.subr.mxu0 0.0
    %1632 = vmatpush1.msra.mxu0 0.0
    %1633 = vmatprep.subr.mxu0 0.0
    %1634 = vmatpush1.msra.mxu0 0.0
    %1635 = vmatprep.subr.mxu0 0.0
    %1636 = vmatpush1.msra.mxu0 0.0
    %1637 = vmatprep.subr.mxu0 0.0
    %1638 = vmatpush1.msra.mxu0 0.0
    %1639 = vmatprep.subr.mxu0 0.0
    %1640 = vmatpush1.msra.mxu0 0.0
    %1641 = vmatprep.subr.mxu0 0.0
    %1642 = vmatpush1.msra.mxu0 0.0
    %1643 = vmatprep.subr.mxu0 0.0
    %1644 = vmatpush1.msra.mxu0 0.0
    %1645 = vmatprep.subr.mxu0 0.0
    %1646 = vmatpush1.msra.mxu0 0.0
    %1647 = vmatprep.subr.mxu0 0.0
    %1648 = vmatpush1.msra.mxu0 0.0
    %1649 = vmatprep.subr.mxu0 0.0
    %1650 = vmatpush1.msra.mxu0 0.0
    %1651 = vmatprep.subr.mxu0 0.0
    %1652 = vmatpush1.msra.mxu0 0.0
    %1653 = vmatprep.subr.mxu0 0.0
    %1654 = vmatpush1.msra.mxu0 0.0
    %1655 = vmatprep.subr.mxu0 0.0
    %1656 = vmatpush1.msra.mxu0 %v1617
    %1657 = vmatprep.subr.mxu0 0.0
    %1658 = vmatpush1.msra.mxu0 %v1616
    %1659 = vmatprep.subr.mxu0 0.0
    %1660 = vmatpush1.msra.mxu0 %v1615
    %1661 = vmatprep.subr.mxu0 0.0
    %1662 = vmatpush1.msra.mxu0 %v1614
    %1663 = vmatprep.subr.mxu0 0.0
    %1664 = vmatpush2.msra.mxu0 0.0
    %1665 = vmatprep.subr.mxu0 0.0
    %1666 = vmatpush2.msra.mxu0 0.0
    %1667 = vmatprep.subr.mxu0 0.0
    %1668 = vmatpush2.msra.mxu0 0.0
    %1669 = vmatprep.subr.mxu0 0.0
    %1670 = vmatpush2.msra.mxu0 0.0
    %1671 = vmatprep.subr.mxu0 0.0
    %1672 = vmatpush2.msra.mxu0 0.0
    %1673 = vmatprep.subr.mxu0 0.0
    %1674 = vmatpush2.msra.mxu0 0.0
    %1675 = vmatprep.subr.mxu0 0.0
    %1676 = vmatpush2.msra.mxu0 0.0
    %1677 = vmatprep.subr.mxu0 0.0
    %1678 = vmatpush2.msra.mxu0 0.0
    %1679 = vmatprep.subr.mxu0 0.0
    %1680 = vmatpush2.msra.mxu0 0.0
    %1681 = vmatprep.subr.mxu0 0.0
    %1682 = vmatpush2.msra.mxu0 0.0
    %1683 = vmatprep.subr.mxu0 0.0
    %1684 = vmatpush2.msra.mxu0 0.0
    %1685 = vmatprep.subr.mxu0 0.0
    %1686 = vmatpush2.msra.mxu0 0.0
    %1687 = vmatprep.subr.mxu0 0.0
    %1688 = vmatpush2.msra.mxu0 0.0
    %1689 = vmatprep.subr.mxu0 0.0
    %1690 = vmatpush2.msra.mxu0 0.0
    %1691 = vmatprep.subr.mxu0 0.0
    %1692 = vmatpush2.msra.mxu0 0.0
    %1693 = vmatprep.subr.mxu0 0.0
    %1694 = vmatpush2.msra.mxu0 0.0
    %1695 = vmatprep.mubr.f32.mxu0 0.0
    %1696 = vmatmul.mubr.f32.gmra.mxu0 %v1629
    %v1697 = vpop.f32.mrf.mxu0
    %v1698 = vadd.f32 %v1623, %v1697
    %v1699 = vpop.f32.mrf.mxu0
    %1700 = vdwg.mxu0
    %v1701 = vmax.f32 %v1698, 0.0
    %v1702 = vld [vmem:[%s6] sm:$0xff]
    %v1703 = vld [vmem:[%s6 + $0x8] sm:$0xff]
    %v1704 = vld [vmem:[%s7] sm:$0x1]
    %v1706 = vlaneseq
    %v1707 = vshrl.u32 %v1706, 7
    %v1708 = vsub.s32 0, %v1707
    %v1709 = vrot.slane %v1704, %v1708
    %vm1711 = vcmask 130048
    %v1713 = vsel %vm1711, %v1701, 0
    %1715 = vmatprep.subr.mxu0 0.0
    %1716 = vmatpush1.msra.mxu0 0.0
    %1717 = vmatprep.subr.mxu0 0.0
    %1718 = vmatpush1.msra.mxu0 0.0
    %1719 = vmatprep.subr.mxu0 0.0
    %1720 = vmatpush1.msra.mxu0 0.0
    %1721 = vmatprep.subr.mxu0 0.0
    %1722 = vmatpush1.msra.mxu0 0.0
    %1723 = vmatprep.subr.mxu0 0.0
    %1724 = vmatpush1.msra.mxu0 0.0
    %1725 = vmatprep.subr.mxu0 0.0
    %1726 = vmatpush1.msra.mxu0 0.0
    %1727 = vmatprep.subr.mxu0 0.0
    %1728 = vmatpush1.msra.mxu0 0.0
    %1729 = vmatprep.subr.mxu0 0.0
    %1730 = vmatpush1.msra.mxu0 0.0
    %1731 = vmatprep.subr.mxu0 0.0
    %1732 = vmatpush1.msra.mxu0 0.0
    %1733 = vmatprep.subr.mxu0 0.0
    %1734 = vmatpush1.msra.mxu0 0.0
    %1735 = vmatprep.subr.mxu0 0.0
    %1736 = vmatpush1.msra.mxu0 0.0
    %1737 = vmatprep.subr.mxu0 0.0
    %1738 = vmatpush1.msra.mxu0 0.0
    %1739 = vmatprep.subr.mxu0 0.0
    %1740 = vmatpush1.msra.mxu0 0.0
    %1741 = vmatprep.subr.mxu0 0.0
    %1742 = vmatpush1.msra.mxu0 0.0
    %1743 = vmatprep.subr.mxu0 0.0
    %1744 = vmatpush1.msra.mxu0 %v1703
    %1745 = vmatprep.subr.mxu0 0.0
    %1746 = vmatpush1.msra.mxu0 %v1702
    %1747 = vmatprep.subr.mxu0 0.0
    %1748 = vmatpush2.msra.mxu0 0.0
    %1749 = vmatprep.subr.mxu0 0.0
    %1750 = vmatpush2.msra.mxu0 0.0
    %1751 = vmatprep.subr.mxu0 0.0
    %1752 = vmatpush2.msra.mxu0 0.0
    %1753 = vmatprep.subr.mxu0 0.0
    %1754 = vmatpush2.msra.mxu0 0.0
    %1755 = vmatprep.subr.mxu0 0.0
    %1756 = vmatpush2.msra.mxu0 0.0
    %1757 = vmatprep.subr.mxu0 0.0
    %1758 = vmatpush2.msra.mxu0 0.0
    %1759 = vmatprep.subr.mxu0 0.0
    %1760 = vmatpush2.msra.mxu0 0.0
    %1761 = vmatprep.subr.mxu0 0.0
    %1762 = vmatpush2.msra.mxu0 0.0
    %1763 = vmatprep.subr.mxu0 0.0
    %1764 = vmatpush2.msra.mxu0 0.0
    %1765 = vmatprep.subr.mxu0 0.0
    %1766 = vmatpush2.msra.mxu0 0.0
    %1767 = vmatprep.subr.mxu0 0.0
    %1768 = vmatpush2.msra.mxu0 0.0
    %1769 = vmatprep.subr.mxu0 0.0
    %1770 = vmatpush2.msra.mxu0 0.0
    %1771 = vmatprep.subr.mxu0 0.0
    %1772 = vmatpush2.msra.mxu0 0.0
    %1773 = vmatprep.subr.mxu0 0.0
    %1774 = vmatpush2.msra.mxu0 0.0
    %1775 = vmatprep.subr.mxu0 0.0
    %1776 = vmatpush2.msra.mxu0 0.0
    %1777 = vmatprep.subr.mxu0 0.0
    %1778 = vmatpush2.msra.mxu0 0.0
    %1779 = vmatprep.mubr.f32.mxu0 0.0
    %1780 = vmatmul.mubr.f32.gmra.mxu0 %v1713
    %v1781 = vpop.f32.mrf.mxu0
    %v1782 = vadd.f32 %v1709, %v1781
    %v1783 = vpop.f32.mrf.mxu0
    %1784 = vdwg.mxu0
    %v1785 = vmul.f32 %v1782, %v1782
    %vm1786 = vcmask 23552
    %v1787 = vsel %vm1786, %v1785, 0.0
    %1788 = vadd.xlane.f32.xlu0 %v1787
    %v1789 = vpop.xlane.xlu0 %1788
    %v1790 = vrsqrt.pop %v1789
    %v1791 = vmul.f32 %v1789, %v1790
    %vm1792 = vcmp.eq.f32.partialorder %v1789, inf
    %v1793 = vsel %vm1792, %v1789, %v1791
    %vm1794 = vcmp.eq.f32.partialorder %v1789, 0.0
    %v1795 = vand.u32 %v1789, 2147483648
    %v1796 = vsel %vm1794, %v1795, %v1793
    %v1797 = vadd.f32 %v1796, 1e-16
    %v1798 = vrcp.pop %v1797
    %v1799 = vmul.f32 %v1782, %v1798
    %1800 = vst.msk [vmem:[%s8] sm:$0xff] %vm1786, %v1799
    // Predicated region
    $region42: #{tpu_custom_call.1} parent=1 // pred_check
      _
    $region43: #{tpu_custom_call.1} parent=1 // pred_check_branch
      %1802 = sbr.rel (0) target = $region45
    $region44: #{tpu_custom_call.1} parent=1 // pred_region
      _
    $region45: #{tpu_custom_call.1} parent=1 // pred_fallthru
      _
    // Predicated region
    $region46: #{tpu_custom_call.1} parent=1 // pred_check
      _
    $region47: #{tpu_custom_call.1} parent=1 // pred_check_branch
      %1804 = sbr.rel (0) target = $region49
    $region48: #{tpu_custom_call.1} parent=1 // pred_region
      _
    $region49: #{tpu_custom_call.1} parent=1 // pred_fallthru
      _
    %1805 = vsyncpa [#allocation4], 1
    %1806 = vsyncpa [#allocation6], 1

</llo_original>
